<compile_context>
chip_gen: v6e
topology: v6e:2x2x1
jax: 0.10.0
libtpu: 0.0.40
codegen_flags: <defaults>
</compile_context>

<pallas_src>
import functools
import math

import jax
import jax.numpy as jnp
from jax import lax
from jax.experimental import pallas as pl
from jax.experimental.pallas import tpu as pltpu

HIDDEN = 128
N_CLASSES = 20
OUT_PAD = 128          # 128-lane logits -> unmasked lane-dense stores


# ---------------------------------------------------------------------------
# small helpers
# ---------------------------------------------------------------------------
def _round_up(x, m):
    return (x + m - 1) // m * m


def _pad2(a, rows, cols):
    r, c = a.shape
    return jnp.pad(a, ((0, rows - r), (0, cols - c)))


def _blockdiag(a, b):
    ra, ca = a.shape
    rb, cb = b.shape
    top = jnp.concatenate([a, jnp.zeros((ra, cb), a.dtype)], axis=1)
    bot = jnp.concatenate([jnp.zeros((rb, ca), b.dtype), b], axis=1)
    return jnp.concatenate([top, bot], axis=0)


def _relu(x):
    return jnp.maximum(x, 0.0)


def _linb(x, w_ref, b_ref):
    # bf16 MXU operands, f32 accumulation, f32 bias add
    return jnp.dot(x.astype(jnp.bfloat16), w_ref[...],
                   preferred_element_type=jnp.float32) + b_ref[...]


# ---------------------------------------------------------------------------
# Kernel A: LocalWeighting (value * gate) + fused q / kT / v projection
# ---------------------------------------------------------------------------
def encode_kernel(hidden, cp, q_scale,
                  x_ref, w1, b1, w2, b2, w3, b3, w4, b4, wqkv, bqkv,
                  q_ref, kT_ref, v_ref):
    x = x_ref[...]                                    # (tn, in) f32

    # value (depth=4) and gate (depth=3) LocalMLPs fused:
    #   layer 1 concatenated, layers 2-3 block-diagonal 256-wide weights.
    h = _relu(_linb(x, w1, b1))                       # (tn, 2H) = [value_h | gate_h]
    h = _relu(_linb(h, w2, b2))                       # (tn, 2H)
    h = _relu(_linb(h, w3, b3))                       # (tn, 2H): [value_h | gate, 0...]
    hv = h[:, :hidden]
    gate = h[:, hidden:hidden + 1]                    # (tn, 1)  LocalWeighting.weight
    value = _relu(_linb(hv, w4, b4))                  # (tn, Cp); padded lanes are 0
    feat = value * gate                               # LocalWeighting output

    # fused q/k/v projection: one (Cp, 3Cp) matmul; q pre-scaled by 1/sqrt(C);
    # k stored pre-transposed so Kernel B never transposes on the hot path.
    qkv = _linb(feat, wqkv, bqkv)                     # (tn, 3Cp) f32
    q_ref[...] = (qkv[:, :cp] * q_scale).astype(jnp.bfloat16)
    kT_ref[...] = qkv[:, cp:2 * cp].T.astype(jnp.bfloat16)
    v_ref[...] = qkv[:, 2 * cp:].astype(jnp.bfloat16)


# ---------------------------------------------------------------------------
# Kernel B: blocked neighbour dot attention (exact, gather-free, online softmax)
#           + final LocalMLP -> 128-lane padded logits
# ---------------------------------------------------------------------------
def attend_mlp_kernel(q_ref, kT_ref, v_ref, s_ref,
                      mw1, mb1, mw2, mb2, mw3, mb3, mw4, mb4,
                      o_ref, m_sc, l_sc, acc_sc):
    j = pl.program_id(1)

    @pl.when(j == 0)
    def _():
        m_sc[...] = jnp.full_like(m_sc, -jnp.inf)
        l_sc[...] = jnp.zeros_like(l_sc)
        acc_sc[...] = jnp.zeros_like(acc_sc)

    q = q_ref[...]                                    # (tn, Cp) bf16, pre-scaled
    kT = kT_ref[...]                                  # (Cp, tkv) bf16
    st = s_ref[...]                                   # (tn, K) int32 neighbour ids
    tn = q.shape[0]
    tkv = kT.shape[1]

    # dense scores on the MXU for this kv block
    scores = jnp.dot(q, kT, preferred_element_type=jnp.float32)     # (tn, tkv) f32

    # count[i, n] = #{ jj : structure[i, jj] == n } for nodes in this kv block.
    # Exactly reproduces the gather softmax (duplicates included) and masks padded
    # kv rows / padded query rows safely. int32 accumulate, single cast afterwards.
    col_ids = j * tkv + lax.broadcasted_iota(jnp.int32, (tn, tkv), 1)
    count_i = jnp.zeros((tn, tkv), jnp.int32)
    for jj in range(st.shape[1]):                     # K is small & static
        count_i = count_i + (st[:, jj:jj + 1] == col_ids).astype(jnp.int32)
    present = count_i > 0
    count = count_i.astype(jnp.float32)

    # online softmax update (f32 statistics)
    s_msk = jnp.where(present, scores, jnp.float32(-1e30))
    m_prev = m_sc[...]
    m_new = jnp.maximum(m_prev, jnp.max(s_msk, axis=-1, keepdims=True))
    alpha = jnp.exp(m_prev - m_new)
    p = count * jnp.exp(s_msk - m_new)                # softmax numerators
    l_sc[...] = alpha * l_sc[...] + jnp.sum(p, axis=-1, keepdims=True)
    acc_sc[...] = alpha * acc_sc[...] + jnp.dot(
        p.astype(jnp.bfloat16), v_ref[...], preferred_element_type=jnp.float32)
    m_sc[...] = m_new

    @pl.when(j == pl.num_programs(1) - 1)
    def _():
        attn = acc_sc[...] * pl.reciprocal(l_sc[...], approx=True)   # (tn, Cp) f32
        # final LocalMLP (depth=4) -> 128-lane padded logits, lane-dense store
        h = _relu(_linb(attn, mw1, mb1))
        h = _relu(_linb(h, mw2, mb2))
        h = _relu(_linb(h, mw3, mb3))
        o_ref[...] = _relu(_linb(h, mw4, mb4))        # (tn, OUT_PAD)


# ---------------------------------------------------------------------------
# Parameter init (deterministic, PyTorch-Linear-style uniform(-1/sqrt(fan_in)))
# ---------------------------------------------------------------------------
def init_params(key, in_size, out_size, hidden=HIDDEN):
    layer_dims = {
        # LocalWeighting.value : LocalMLP(in_size, out_size, depth=4)
        "v1": (in_size, hidden), "v2": (hidden, hidden),
        "v3": (hidden, hidden), "v4": (hidden, out_size),
        # LocalWeighting.weight: LocalMLP(in_size, 1, depth=3)
        "g1": (in_size, hidden), "g2": (hidden, hidden), "g3": (hidden, 1),
        # NeighbourDotAttention projections
        "q": (out_size, out_size), "k": (out_size, out_size), "v": (out_size, out_size),
        # final LocalMLP(out_size, 20, depth=4)
        "m1": (out_size, hidden), "m2": (hidden, hidden),
        "m3": (hidden, hidden), "m4": (hidden, N_CLASSES),
    }
    name_map = {
        "v1": ("vw1", "vb1"), "v2": ("vw2", "vb2"), "v3": ("vw3", "vb3"), "v4": ("vw4", "vb4"),
        "g1": ("gw1", "gb1"), "g2": ("gw2", "gb2"), "g3": ("gw3", "gb3"),
        "q": ("wq", "bq"), "k": ("wk", "bk"), "v": ("wv", "bv"),
        "m1": ("mw1", "mb1"), "m2": ("mw2", "mb2"), "m3": ("mw3", "mb3"), "m4": ("mw4", "mb4"),
    }
    params = {}
    keys = jax.random.split(key, len(layer_dims))
    for kk, (lname, (fi, fo)) in zip(keys, layer_dims.items()):
        kw, kb = jax.random.split(kk)
        bound = 1.0 / math.sqrt(fi)
        wn, bn = name_map[lname]
        params[wn] = jax.random.uniform(kw, (fi, fo), jnp.float32, -bound, bound)
        params[bn] = jax.random.uniform(kb, (1, fo), jnp.float32, -bound, bound)
    return params


# ---------------------------------------------------------------------------
# Wrapper
# ---------------------------------------------------------------------------
def baseline_inverse_fold(params, x, structure, *, tile_n=None):
    N, in_size = x.shape
    K = structure.shape[1]
    p = params
    bf = jnp.bfloat16

    C = p["wq"].shape[1]                     # logical channel size (out_size)
    H = p["vw2"].shape[0]                    # hidden size (128)
    Cp = _round_up(C, 128)                   # lane-padded channel dim

    # node tile: multiple of 128 (lane-dense kT column stores), <=256; aim for >=4
    # node tiles so the two v7x TensorCores each get >=2 pipelined steps.
    if tile_n is None:
        tile_n = max(128, min(256, _round_up(max(N // 4, 1), 128)))
    tile_kv = tile_n
    Np = _round_up(N, tile_n)
    nq = Np // tile_n
    nkv = Np // tile_kv

    # node-axis padding (padded rows use neighbour index 0; outputs are sliced off)
    xp = jnp.pad(x, ((0, Np - N), (0, 0)))
    sp = jnp.pad(structure, ((0, Np - N), (0, 0)))

    # ---- weight packing / lane padding / bf16 cast (once, outside the kernels) ----
    w1 = jnp.concatenate([p["vw1"], p["gw1"]], axis=1).astype(bf)           # (in, 2H)
    b1 = jnp.concatenate([p["vb1"], p["gb1"]], axis=1)
    w2 = _blockdiag(p["vw2"], p["gw2"]).astype(bf)                          # (2H, 2H)
    b2 = jnp.concatenate([p["vb2"], p["gb2"]], axis=1)
    w3 = _blockdiag(p["vw3"], _pad2(p["gw3"], H, H)).astype(bf)             # (2H, 2H)
    b3 = jnp.concatenate([p["vb3"], _pad2(p["gb3"], 1, H)], axis=1)
    w4 = _pad2(p["vw4"], H, Cp).astype(bf)                                  # (H, Cp)
    b4 = _pad2(p["vb4"], 1, Cp)
    w_qkv = jnp.concatenate([_pad2(p["wq"], Cp, Cp), _pad2(p["wk"], Cp, Cp),
                             _pad2(p["wv"], Cp, Cp)], axis=1).astype(bf)    # (Cp, 3Cp)
    b_qkv = jnp.concatenate([_pad2(p["bq"], 1, Cp), _pad2(p["bk"], 1, Cp),
                             _pad2(p["bv"], 1, Cp)], axis=1)
    mw1 = _pad2(p["mw1"], Cp, H).astype(bf)
    mw2 = p["mw2"].astype(bf)
    mw3 = p["mw3"].astype(bf)
    mw4 = _pad2(p["mw4"], H, OUT_PAD).astype(bf)
    mb4 = _pad2(p["mb4"], 1, OUT_PAD)

    enc_w = [w1, b1, w2, b2, w3, b3, w4, b4, w_qkv, b_qkv]
    mlp_w = [mw1, p["mb1"], mw2, p["mb2"], mw3, p["mb3"], mw4, mb4]

    def full1(arrs):
        return [pl.BlockSpec(a.shape, lambda i: (0, 0)) for a in arrs]

    def full2(arrs):
        return [pl.BlockSpec(a.shape, lambda i, j: (0, 0)) for a in arrs]

    # ---------------- Kernel A: LocalWeighting + fused q/kT/v projection -------------
    q_arr, kT_arr, v_arr = pl.pallas_call(
        functools.partial(encode_kernel, H, Cp, 1.0 / math.sqrt(C)),
        grid=(nq,),
        in_specs=[pl.BlockSpec((tile_n, in_size), lambda i: (i, 0))] + full1(enc_w),
        out_specs=[pl.BlockSpec((tile_n, Cp), lambda i: (i, 0)),
                   pl.BlockSpec((Cp, tile_n), lambda i: (0, i)),
                   pl.BlockSpec((tile_n, Cp), lambda i: (i, 0))],
        out_shape=[jax.ShapeDtypeStruct((Np, Cp), jnp.bfloat16),
                   jax.ShapeDtypeStruct((Cp, Np), jnp.bfloat16),
                   jax.ShapeDtypeStruct((Np, Cp), jnp.bfloat16)],
        compiler_params=pltpu.CompilerParams(dimension_semantics=("parallel",)),
    )(xp, *enc_w)

    # ---------- Kernel B: blocked neighbour attention (online softmax) + MLP ---------
    logits = pl.pallas_call(
        attend_mlp_kernel,
        grid=(nq, nkv),
        in_specs=[pl.BlockSpec((tile_n, Cp), lambda i, j: (i, 0)),
                  pl.BlockSpec((Cp, tile_kv), lambda i, j: (0, j)),
                  pl.BlockSpec((tile_kv, Cp), lambda i, j: (j, 0)),
                  pl.BlockSpec((tile_n, K), lambda i, j: (i, 0))] + full2(mlp_w),
        out_specs=pl.BlockSpec((tile_n, OUT_PAD), lambda i, j: (i, 0)),
        out_shape=jax.ShapeDtypeStruct((Np, OUT_PAD), jnp.float32),
        scratch_shapes=[pltpu.VMEM((tile_n, 1), jnp.float32),
                        pltpu.VMEM((tile_n, 1), jnp.float32),
                        pltpu.VMEM((tile_n, Cp), jnp.float32)],
        compiler_params=pltpu.CompilerParams(
            dimension_semantics=("parallel", "arbitrary")),
    )(q_arr, kT_arr, v_arr, sp, *mlp_w)

    return logits[:N, :N_CLASSES]


# ---------------------------------------------------------------------------
# Pure-JAX reference (f32, for verification)
# ---------------------------------------------------------------------------
def reference(params, x, structure):
    hi = jax.lax.Precision.HIGHEST

    def lin(h, w, b):
        return jnp.dot(h, w, precision=hi) + b

    r = jax.nn.relu
    p = params
    # LocalWeighting
    h = r(lin(x, p["vw1"], p["vb1"]))
    h = r(lin(h, p["vw2"], p["vb2"]))
    h = r(lin(h, p["vw3"], p["vb3"]))
    value = r(lin(h, p["vw4"], p["vb4"]))
    g = r(lin(x, p["gw1"], p["gb1"]))
    g = r(lin(g, p["gw2"], p["gb2"]))
    gate = r(lin(g, p["gw3"], p["gb3"]))
    feat = value * gate
    # neighbour dot attention
    q = lin(feat, p["wq"], p["bq"])
    k = lin(feat, p["wk"], p["bk"])
    v = lin(feat, p["wv"], p["bv"])
    k_nb = k[structure]
    v_nb = v[structure]
    scores = jnp.sum(q[:, None, :] * k_nb, axis=-1) / jnp.sqrt(jnp.float32(q.shape[-1]))
    pr = jax.nn.softmax(scores, axis=-1)
    attn = jnp.sum(pr[:, :, None] * v_nb, axis=1)
    # final LocalMLP -> 20
    h = r(lin(attn, p["mw1"], p["mb1"]))
    h = r(lin(h, p["mw2"], p["mb2"]))
    h = r(lin(h, p["mw3"], p["mb3"]))
    return r(lin(h, p["mw4"], p["mb4"]))


# ---------------------------------------------------------------------------
if __name__ == "__main__":
    key = jax.random.PRNGKey(0)
    k_x, k_s, k_p = jax.random.split(key, 3)

    N, K = 512, 8
    in_size, out_size = 32, 32

    x = jax.random.normal(k_x, (N, in_size), jnp.float32)
    structure = jax.random.randint(k_s, (N, K), 0, N, dtype=jnp.int32)
    params = init_params(k_p, in_size, out_size)

    out = baseline_inverse_fold(params, x, structure)   # tile_n=128 -> grids (4,) and (4,4)
    out = jax.block_until_ready(out)

    ref = reference(params, x, structure)
    assert out.shape == (N, N_CLASSES)
    err = float(jnp.max(jnp.abs(out - ref)))
    # bf16 MXU operands with f32 accumulation: observed error well under this bound.
    assert jnp.allclose(out, ref, atol=2e-2, rtol=2e-2), err

    print("KERNEL_OK")
</pallas_src>

<mosaic_0001>
module attributes {stable_mosaic.version = 11 : i64} {
  func.func @encode_kernel(%arg0: i32, %arg1: memref<128x32xf32, #tpu.memory_space<vmem>>, %arg2: memref<32x256xbf16, #tpu.memory_space<vmem>>, %arg3: memref<1x256xf32, #tpu.memory_space<vmem>>, %arg4: memref<256x256xbf16, #tpu.memory_space<vmem>>, %arg5: memref<1x256xf32, #tpu.memory_space<vmem>>, %arg6: memref<256x256xbf16, #tpu.memory_space<vmem>>, %arg7: memref<1x256xf32, #tpu.memory_space<vmem>>, %arg8: memref<128x128xbf16, #tpu.memory_space<vmem>>, %arg9: memref<1x128xf32, #tpu.memory_space<vmem>>, %arg10: memref<128x384xbf16, #tpu.memory_space<vmem>>, %arg11: memref<1x384xf32, #tpu.memory_space<vmem>>, %arg12: memref<128x128xbf16, #tpu.memory_space<vmem>>, %arg13: memref<128x128xbf16, #tpu.memory_space<vmem>>, %arg14: memref<128x128xbf16, #tpu.memory_space<vmem>>) attributes {dimension_semantics = [#tpu.dimension_semantics<parallel>], iteration_bounds = array<i64: 4>, scalar_prefetch = 0 : i64, scratch_operands = 0 : i64, tpu.core_type = #tpu.core_type<tc>, window_params = [{transform_indices = @transform_0, window_bounds = array<i64: 128, 32>}, {pipeline_mode = #tpu.pipeline_mode<synchronous>, transform_indices = @transform_1, window_bounds = array<i64: 32, 256>}, {pipeline_mode = #tpu.pipeline_mode<synchronous>, transform_indices = @transform_2, window_bounds = array<i64: 1, 256>}, {pipeline_mode = #tpu.pipeline_mode<synchronous>, transform_indices = @transform_3, window_bounds = array<i64: 256, 256>}, {pipeline_mode = #tpu.pipeline_mode<synchronous>, transform_indices = @transform_4, window_bounds = array<i64: 1, 256>}, {pipeline_mode = #tpu.pipeline_mode<synchronous>, transform_indices = @transform_5, window_bounds = array<i64: 256, 256>}, {pipeline_mode = #tpu.pipeline_mode<synchronous>, transform_indices = @transform_6, window_bounds = array<i64: 1, 256>}, {pipeline_mode = #tpu.pipeline_mode<synchronous>, transform_indices = @transform_7, window_bounds = array<i64: 128, 128>}, {pipeline_mode = #tpu.pipeline_mode<synchronous>, transform_indices = @transform_8, window_bounds = array<i64: 1, 128>}, {pipeline_mode = #tpu.pipeline_mode<synchronous>, transform_indices = @transform_9, window_bounds = array<i64: 128, 384>}, {pipeline_mode = #tpu.pipeline_mode<synchronous>, transform_indices = @transform_10, window_bounds = array<i64: 1, 384>}, {transform_indices = @transform_11, window_bounds = array<i64: 128, 128>}, {transform_indices = @transform_12, window_bounds = array<i64: 128, 128>}, {transform_indices = @transform_13, window_bounds = array<i64: 128, 128>}]} {
    %c0 = arith.constant 0 : index
    %c0_0 = arith.constant 0 : index
    %0 = vector.load %arg1[%c0, %c0_0] : memref<128x32xf32, #tpu.memory_space<vmem>>, vector<128x32xf32>
    %1 = arith.truncf %0 : vector<128x32xf32> to vector<128x32xbf16>
    %c0_1 = arith.constant 0 : index
    %c0_2 = arith.constant 0 : index
    %2 = vector.load %arg2[%c0_1, %c0_2] : memref<32x256xbf16, #tpu.memory_space<vmem>>, vector<32x256xbf16>
    %cst = arith.constant dense<0.000000e+00> : vector<128x256xf32>
    %3 = tpu.matmul %1, %2, %cst {dimension_numbers = #tpu.dot_dimension_numbers<[1], [0], [0], [1], [0, 0, 1, 1], [], []>} : vector<128x32xbf16>, vector<32x256xbf16>, vector<128x256xf32> -> vector<128x256xf32>
    %c0_3 = arith.constant 0 : index
    %c0_4 = arith.constant 0 : index
    %4 = vector.load %arg3[%c0_3, %c0_4] : memref<1x256xf32, #tpu.memory_space<vmem>>, vector<1x256xf32>
    %5 = vector.broadcast %4 : vector<1x256xf32> to vector<128x256xf32>
    %6 = arith.addf %3, %5 : vector<128x256xf32>
    %cst_5 = arith.constant 0.000000e+00 : f32
    %7 = vector.broadcast %cst_5 : f32 to vector<128x256xf32>
    %8 = arith.maximumf %6, %7 : vector<128x256xf32>
    %9 = arith.truncf %8 : vector<128x256xf32> to vector<128x256xbf16>
    %c0_6 = arith.constant 0 : index
    %c0_7 = arith.constant 0 : index
    %10 = vector.load %arg4[%c0_6, %c0_7] : memref<256x256xbf16, #tpu.memory_space<vmem>>, vector<256x256xbf16>
    %cst_8 = arith.constant dense<0.000000e+00> : vector<128x256xf32>
    %11 = tpu.matmul %9, %10, %cst_8 {dimension_numbers = #tpu.dot_dimension_numbers<[1], [0], [0], [1], [0, 0, 1, 1], [], []>} : vector<128x256xbf16>, vector<256x256xbf16>, vector<128x256xf32> -> vector<128x256xf32>
    %c0_9 = arith.constant 0 : index
    %c0_10 = arith.constant 0 : index
    %12 = vector.load %arg5[%c0_9, %c0_10] : memref<1x256xf32, #tpu.memory_space<vmem>>, vector<1x256xf32>
    %13 = vector.broadcast %12 : vector<1x256xf32> to vector<128x256xf32>
    %14 = arith.addf %11, %13 : vector<128x256xf32>
    %cst_11 = arith.constant 0.000000e+00 : f32
    %15 = vector.broadcast %cst_11 : f32 to vector<128x256xf32>
    %16 = arith.maximumf %14, %15 : vector<128x256xf32>
    %17 = arith.truncf %16 : vector<128x256xf32> to vector<128x256xbf16>
    %c0_12 = arith.constant 0 : index
    %c0_13 = arith.constant 0 : index
    %18 = vector.load %arg6[%c0_12, %c0_13] : memref<256x256xbf16, #tpu.memory_space<vmem>>, vector<256x256xbf16>
    %cst_14 = arith.constant dense<0.000000e+00> : vector<128x256xf32>
    %19 = tpu.matmul %17, %18, %cst_14 {dimension_numbers = #tpu.dot_dimension_numbers<[1], [0], [0], [1], [0, 0, 1, 1], [], []>} : vector<128x256xbf16>, vector<256x256xbf16>, vector<128x256xf32> -> vector<128x256xf32>
    %c0_15 = arith.constant 0 : index
    %c0_16 = arith.constant 0 : index
    %20 = vector.load %arg7[%c0_15, %c0_16] : memref<1x256xf32, #tpu.memory_space<vmem>>, vector<1x256xf32>
    %21 = vector.broadcast %20 : vector<1x256xf32> to vector<128x256xf32>
    %22 = arith.addf %19, %21 : vector<128x256xf32>
    %cst_17 = arith.constant 0.000000e+00 : f32
    %23 = vector.broadcast %cst_17 : f32 to vector<128x256xf32>
    %24 = arith.maximumf %22, %23 : vector<128x256xf32>
    %25 = vector.extract_strided_slice %24 {offsets = [0, 0], sizes = [128, 128], strides = [1, 1]} : vector<128x256xf32> to vector<128x128xf32>
    %26 = vector.extract_strided_slice %24 {offsets = [0, 128], sizes = [128, 1], strides = [1, 1]} : vector<128x256xf32> to vector<128x1xf32>
    %27 = arith.truncf %25 : vector<128x128xf32> to vector<128x128xbf16>
    %c0_18 = arith.constant 0 : index
    %c0_19 = arith.constant 0 : index
    %28 = vector.load %arg8[%c0_18, %c0_19] : memref<128x128xbf16, #tpu.memory_space<vmem>>, vector<128x128xbf16>
    %cst_20 = arith.constant dense<0.000000e+00> : vector<128x128xf32>
    %29 = tpu.matmul %27, %28, %cst_20 {dimension_numbers = #tpu.dot_dimension_numbers<[1], [0], [0], [1], [0, 0, 1, 1], [], []>} : vector<128x128xbf16>, vector<128x128xbf16>, vector<128x128xf32> -> vector<128x128xf32>
    %c0_21 = arith.constant 0 : index
    %c0_22 = arith.constant 0 : index
    %30 = vector.load %arg9[%c0_21, %c0_22] : memref<1x128xf32, #tpu.memory_space<vmem>>, vector<1x128xf32>
    %31 = vector.broadcast %30 : vector<1x128xf32> to vector<128x128xf32>
    %32 = arith.addf %29, %31 : vector<128x128xf32>
    %cst_23 = arith.constant 0.000000e+00 : f32
    %33 = vector.broadcast %cst_23 : f32 to vector<128x128xf32>
    %34 = arith.maximumf %32, %33 : vector<128x128xf32>
    %35 = vector.broadcast %26 : vector<128x1xf32> to vector<128x128xf32>
    %36 = arith.mulf %34, %35 : vector<128x128xf32>
    %37 = arith.truncf %36 : vector<128x128xf32> to vector<128x128xbf16>
    %c0_24 = arith.constant 0 : index
    %c0_25 = arith.constant 0 : index
    %38 = vector.load %arg10[%c0_24, %c0_25] : memref<128x384xbf16, #tpu.memory_space<vmem>>, vector<128x384xbf16>
    %cst_26 = arith.constant dense<0.000000e+00> : vector<128x384xf32>
    %39 = tpu.matmul %37, %38, %cst_26 {dimension_numbers = #tpu.dot_dimension_numbers<[1], [0], [0], [1], [0, 0, 1, 1], [], []>} : vector<128x128xbf16>, vector<128x384xbf16>, vector<128x384xf32> -> vector<128x384xf32>
    %c0_27 = arith.constant 0 : index
    %c0_28 = arith.constant 0 : index
    %40 = vector.load %arg11[%c0_27, %c0_28] : memref<1x384xf32, #tpu.memory_space<vmem>>, vector<1x384xf32>
    %41 = vector.broadcast %40 : vector<1x384xf32> to vector<128x384xf32>
    %42 = arith.addf %39, %41 : vector<128x384xf32>
    %43 = vector.extract_strided_slice %42 {offsets = [0, 0], sizes = [128, 128], strides = [1, 1]} : vector<128x384xf32> to vector<128x128xf32>
    %cst_29 = arith.constant 0.176776692 : f32
    %44 = vector.broadcast %cst_29 : f32 to vector<128x128xf32>
    %45 = arith.mulf %43, %44 : vector<128x128xf32>
    %46 = arith.truncf %45 : vector<128x128xf32> to vector<128x128xbf16>
    %c0_30 = arith.constant 0 : index
    %c0_31 = arith.constant 0 : index
    %47 = vector.load %arg12[%c0_30, %c0_31] : memref<128x128xbf16, #tpu.memory_space<vmem>>, vector<128x128xbf16>
    tpu.vector_store %arg12[%c0_30, %c0_31], %46 {strides = array<i32>} : memref<128x128xbf16, #tpu.memory_space<vmem>>, vector<128x128xbf16>,
    %48 = vector.extract_strided_slice %42 {offsets = [0, 128], sizes = [128, 128], strides = [1, 1]} : vector<128x384xf32> to vector<128x128xf32>
    %49 = tpu.transpose %48, [1, 0] : vector<128x128xf32> -> vector<128x128xf32>
    %50 = arith.truncf %49 : vector<128x128xf32> to vector<128x128xbf16>
    %c0_32 = arith.constant 0 : index
    %c0_33 = arith.constant 0 : index
    %51 = vector.load %arg13[%c0_32, %c0_33] : memref<128x128xbf16, #tpu.memory_space<vmem>>, vector<128x128xbf16>
    tpu.vector_store %arg13[%c0_32, %c0_33], %50 {strides = array<i32>} : memref<128x128xbf16, #tpu.memory_space<vmem>>, vector<128x128xbf16>,
    %52 = vector.extract_strided_slice %42 {offsets = [0, 256], sizes = [128, 128], strides = [1, 1]} : vector<128x384xf32> to vector<128x128xf32>
    %53 = arith.truncf %52 : vector<128x128xf32> to vector<128x128xbf16>
    %c0_34 = arith.constant 0 : index
    %c0_35 = arith.constant 0 : index
    %54 = vector.load %arg14[%c0_34, %c0_35] : memref<128x128xbf16, #tpu.memory_space<vmem>>, vector<128x128xbf16>
    tpu.vector_store %arg14[%c0_34, %c0_35], %53 {strides = array<i32>} : memref<128x128xbf16, #tpu.memory_space<vmem>>, vector<128x128xbf16>,
    return
  }
  func.func @transform_0(%arg0: i32) -> (i32, i32) {
    %c0_i32 = arith.constant 0 : i32
    %c0_i32_0 = arith.constant 0 : i32
    return %arg0, %c0_i32 : i32, i32
  }
  func.func @transform_1(%arg0: i32) -> (i32, i32) {
    %c0_i32 = arith.constant 0 : i32
    %c0_i32_0 = arith.constant 0 : i32
    %c0_i32_1 = arith.constant 0 : i32
    return %c0_i32, %c0_i32_0 : i32, i32
  }
  func.func @transform_2(%arg0: i32) -> (i32, i32) {
    %c0_i32 = arith.constant 0 : i32
    %c0_i32_0 = arith.constant 0 : i32
    %c0_i32_1 = arith.constant 0 : i32
    return %c0_i32, %c0_i32_0 : i32, i32
  }
  func.func @transform_3(%arg0: i32) -> (i32, i32) {
    %c0_i32 = arith.constant 0 : i32
    %c0_i32_0 = arith.constant 0 : i32
    %c0_i32_1 = arith.constant 0 : i32
    return %c0_i32, %c0_i32_0 : i32, i32
  }
  func.func @transform_4(%arg0: i32) -> (i32, i32) {
    %c0_i32 = arith.constant 0 : i32
    %c0_i32_0 = arith.constant 0 : i32
    %c0_i32_1 = arith.constant 0 : i32
    return %c0_i32, %c0_i32_0 : i32, i32
  }
  func.func @transform_5(%arg0: i32) -> (i32, i32) {
    %c0_i32 = arith.constant 0 : i32
    %c0_i32_0 = arith.constant 0 : i32
    %c0_i32_1 = arith.constant 0 : i32
    return %c0_i32, %c0_i32_0 : i32, i32
  }
  func.func @transform_6(%arg0: i32) -> (i32, i32) {
    %c0_i32 = arith.constant 0 : i32
    %c0_i32_0 = arith.constant 0 : i32
    %c0_i32_1 = arith.constant 0 : i32
    return %c0_i32, %c0_i32_0 : i32, i32
  }
  func.func @transform_7(%arg0: i32) -> (i32, i32) {
    %c0_i32 = arith.constant 0 : i32
    %c0_i32_0 = arith.constant 0 : i32
    %c0_i32_1 = arith.constant 0 : i32
    return %c0_i32, %c0_i32_0 : i32, i32
  }
  func.func @transform_8(%arg0: i32) -> (i32, i32) {
    %c0_i32 = arith.constant 0 : i32
    %c0_i32_0 = arith.constant 0 : i32
    %c0_i32_1 = arith.constant 0 : i32
    return %c0_i32, %c0_i32_0 : i32, i32
  }
  func.func @transform_9(%arg0: i32) -> (i32, i32) {
    %c0_i32 = arith.constant 0 : i32
    %c0_i32_0 = arith.constant 0 : i32
    %c0_i32_1 = arith.constant 0 : i32
    return %c0_i32, %c0_i32_0 : i32, i32
  }
  func.func @transform_10(%arg0: i32) -> (i32, i32) {
    %c0_i32 = arith.constant 0 : i32
    %c0_i32_0 = arith.constant 0 : i32
    %c0_i32_1 = arith.constant 0 : i32
    return %c0_i32, %c0_i32_0 : i32, i32
  }
  func.func @transform_11(%arg0: i32) -> (i32, i32) {
    %c0_i32 = arith.constant 0 : i32
    %c0_i32_0 = arith.constant 0 : i32
    return %arg0, %c0_i32 : i32, i32
  }
  func.func @transform_12(%arg0: i32) -> (i32, i32) {
    %c0_i32 = arith.constant 0 : i32
    %c0_i32_0 = arith.constant 0 : i32
    return %c0_i32, %arg0 : i32, i32
  }
  func.func @transform_13(%arg0: i32) -> (i32, i32) {
    %c0_i32 = arith.constant 0 : i32
    %c0_i32_0 = arith.constant 0 : i32
    return %arg0, %c0_i32 : i32, i32
  }
}

</mosaic_0001>

<llo_original>
// kernel: tpu_custom_call.1
$region0: #{tpu_custom_call.1}
  #allocation0 [shape = 'u32[]', space=smem, size = 0x4, offset = 0x4, fixed_abs, tag = 'smem constant byte address 0x4 - core index']
  #allocation1 [shape = 'u32[144,128]{1,0:T(1,128)}', space=vmem, size = 0x12000, scoped, tag = 'internal scratch']
  %s0 = inlined_call_operand.vmem [shape: f32[512,32], index: 0, kind: input, shape index: {}]
  %s1 = inlined_call_operand.vmem [shape: bf16[32,256], index: 1, kind: input, shape index: {}]
  %s2 = inlined_call_operand.vmem [shape: f32[1,256], index: 2, kind: input, shape index: {}]
  %s3 = inlined_call_operand.vmem [shape: bf16[256,256], index: 3, kind: input, shape index: {}]
  %s4 = inlined_call_operand.vmem [shape: f32[1,256], index: 4, kind: input, shape index: {}]
  %s5 = inlined_call_operand.vmem [shape: bf16[256,256], index: 5, kind: input, shape index: {}]
  %s6 = inlined_call_operand.vmem [shape: f32[1,256], index: 6, kind: input, shape index: {}]
  %s7 = inlined_call_operand.vmem [shape: bf16[128,128], index: 7, kind: input, shape index: {}]
  %s8 = inlined_call_operand.vmem [shape: f32[1,128], index: 8, kind: input, shape index: {}]
  %s9 = inlined_call_operand.hbm [shape: bf16[128,384], index: 9, kind: input, shape index: {}]
  %s10 = inlined_call_operand.vmem [shape: f32[1,384], index: 10, kind: input, shape index: {}]
  %s11 = inlined_call_operand.hbm [shape: bf16[512,128], index: 11, kind: output, shape index: {0}]
  %s12 = inlined_call_operand.hbm [shape: bf16[128,512], index: 12, kind: output, shape index: {1}]
  %s13 = inlined_call_operand.hbm [shape: bf16[512,128], index: 13, kind: output, shape index: {2}]
  %14 = xla_tuple %s11, %s12, %s13
  %s15 = sld [smem:[#allocation0]]
  $region97: #{tpu_custom_call.1} parent=0
    _
  %s17 = ssub.s32 1, %s15
  %s18 = scalar_select 0, %s17, %s15
  $region1: #{tpu_custom_call.1} parent=0
    #allocation2 [shape = 'u8[98304]{0}', space=vmem, size = 0x18000, scoped, tag = 'input window, operand 9, single buffered']
    #allocation3 [shape = 's32[2]{0}', space=sflag, size = 0x8, scoped, tag = 'scoped memory for tpu_custom_call.1']
    #allocation4 [shape = 's32[2]{0}', space=sflag, size = 0x8, scoped, tag = 'scoped memory for tpu_custom_call.1']
    #allocation5 [shape = 'u8[65536]{0}', space=vmem, size = 0x10000, scoped, tag = 'output window, operand 0']
    #allocation6 [shape = 'u8[65536]{0}', space=vmem, size = 0x10000, scoped, tag = 'output window, operand 1']
    #allocation7 [shape = 's32[2]{0}', space=sflag, size = 0x8, scoped, tag = 'scoped memory for tpu_custom_call.1']
    #allocation8 [shape = 'u8[65536]{0}', space=vmem, size = 0x10000, scoped, tag = 'output window, operand 2']
    %19 = vsyncpa [#allocation3], 0
    %20 = vsyncpa [#allocation4], 0
    %s21 = scalar_lea.sflag [#allocation4], 1
    %22 = vsyncpa %s21, 0
    %23 = vsyncpa [#allocation7], 0
    %s24 = scalar_lea.sflag [#allocation7], 1
    %25 = vsyncpa %s24, 0
    loop: start=0, step=1, limit=6
    $region2: #{tpu_custom_call.1} parent=1 // loop_pre_header
      _
    $region3: #{tpu_custom_call.1} parent=1 // loop_header
      %s27 = sphi 0, %s31
      %p28 = scmp.ge.s32.totalorder %s27, 6
      %s37 = sphi 0, %s39
      %s40 = sphi 0, %s37
      %s41 = sphi 0, %s40
      %s57 = sphi 0, %s41
      %s61 = sphi 0, %s61
      %s63 = sphi 0, %s61
      %s64 = sphi 0, %s63
      %s78 = sphi 0, %s64
      %s82 = sphi 0, %s82
      %s84 = sphi 0, %s82
      %s85 = sphi 0, %s84
      %s99 = sphi 0, %s85
      %s103 = sphi 0, %s103
      %s105 = sphi 0, %s103
      %s106 = sphi 0, %s105
      %s120 = sphi 0, %s106
      %s124 = sphi 0, %s124
      %s126 = sphi 0, %s124
      %s127 = sphi 0, %s126
      %s141 = sphi 0, %s127
      %s145 = sphi 0, %s145
      %s147 = sphi 0, %s145
      %s148 = sphi 0, %s147
      %s162 = sphi 0, %s148
      %s166 = sphi 0, %s166
      %s168 = sphi 0, %s166
      %s169 = sphi 0, %s168
      %s183 = sphi 0, %s169
      %s187 = sphi 0, %s187
      %s189 = sphi 0, %s187
      %s190 = sphi 0, %s189
      %s204 = sphi 0, %s190
      %s208 = sphi 0, %s208
      %s210 = sphi 0, %s208
      %s211 = sphi 0, %s210
      %s225 = sphi 0, %s211
      %s229 = sphi 0, %s229
      %s231 = sphi 0, %s229
      %s232 = sphi 0, %s231
      %s246 = sphi 0, %s232
      %s250 = sphi 0, %s250
      %s252 = sphi 0, %s250
      %s253 = sphi 0, %s252
      %s267 = sphi 0, %s253
      %s273 = sphi 0, %s275
      %s276 = sphi 0, %s273
      %s277 = sphi 0, %s276
      %s293 = sphi 0, %s277
      %s299 = sphi 0, %s301
      %s302 = sphi 0, %s299
      %s303 = sphi 0, %s302
      %s319 = sphi 0, %s303
      %s325 = sphi 0, %s327
      %s328 = sphi 0, %s325
      %s329 = sphi 0, %s328
      %s345 = sphi 0, %s329
    $region4: #{tpu_custom_call.1} parent=1 // loop_header_branch
      %30 = sbr.rel (%p28) target = $region8
    $region5: #{tpu_custom_call.1} parent=1 // loop_body
      %s32 = ssub.s32 %s27, 1
      %s33 = ssub.s32 %s27, 2
      %s34 = sadd.s32 %s27, 1
      %s35 = ssub.s32 %s27, %s34
      %p36 = scmp.eq.s32.totalorder %s35, 0
      %s38 = sadd.s32 %s37, 1
      %s39 = scalar_select %p36, %s37, %s38
      %p42 = pneg %p36
      %p43 = scmp.eq.s32.totalorder %s27, 3
      %p44 = por %p42, %p43
      %p45 = scmp.ne.s32.totalorder %s37, %s40
      %p46 = scmp.eq.s32.totalorder %s27, 0
      %p47 = por %p45, %p46
      %p48 = scmp.ne.s32.totalorder %s37, %s40
      %p49 = scmp.eq.s32.totalorder %s32, 3
      %p50 = por %p48, %p49
      %p51 = scmp.ne.s32.totalorder %s40, %s41
      %p52 = scmp.eq.s32.totalorder %s32, 0
      %p53 = por %p51, %p52
      %p54 = scmp.ne.s32.totalorder %s40, %s41
      %p55 = scmp.eq.s32.totalorder %s33, 3
      %p56 = por %p54, %p55
      %p58 = scmp.ne.s32.totalorder %s41, %s57
      %p59 = scmp.eq.s32.totalorder %s33, 0
      %p60 = por %p58, %p59
      %s62 = sadd.s32 %s61, 1
      %p65 = scmp.eq.s32.totalorder %s27, 3
      %p66 = scmp.ne.s32.totalorder %s61, %s63
      %p67 = scmp.eq.s32.totalorder %s27, 0
      %p68 = por %p66, %p67
      %p69 = scmp.ne.s32.totalorder %s61, %s63
      %p70 = scmp.eq.s32.totalorder %s32, 3
      %p71 = por %p69, %p70
      %p72 = scmp.ne.s32.totalorder %s63, %s64
      %p73 = scmp.eq.s32.totalorder %s32, 0
      %p74 = por %p72, %p73
      %p75 = scmp.ne.s32.totalorder %s63, %s64
      %p76 = scmp.eq.s32.totalorder %s33, 3
      %p77 = por %p75, %p76
      %p79 = scmp.ne.s32.totalorder %s64, %s78
      %p80 = scmp.eq.s32.totalorder %s33, 0
      %p81 = por %p79, %p80
      %s83 = sadd.s32 %s82, 1
      %p86 = scmp.eq.s32.totalorder %s27, 3
      %p87 = scmp.ne.s32.totalorder %s82, %s84
      %p88 = scmp.eq.s32.totalorder %s27, 0
      %p89 = por %p87, %p88
      %p90 = scmp.ne.s32.totalorder %s82, %s84
      %p91 = scmp.eq.s32.totalorder %s32, 3
      %p92 = por %p90, %p91
      %p93 = scmp.ne.s32.totalorder %s84, %s85
      %p94 = scmp.eq.s32.totalorder %s32, 0
      %p95 = por %p93, %p94
      %p96 = scmp.ne.s32.totalorder %s84, %s85
      %p97 = scmp.eq.s32.totalorder %s33, 3
      %p98 = por %p96, %p97
      %p100 = scmp.ne.s32.totalorder %s85, %s99
      %p101 = scmp.eq.s32.totalorder %s33, 0
      %p102 = por %p100, %p101
      %s104 = sadd.s32 %s103, 1
      %p107 = scmp.eq.s32.totalorder %s27, 3
      %p108 = scmp.ne.s32.totalorder %s103, %s105
      %p109 = scmp.eq.s32.totalorder %s27, 0
      %p110 = por %p108, %p109
      %p111 = scmp.ne.s32.totalorder %s103, %s105
      %p112 = scmp.eq.s32.totalorder %s32, 3
      %p113 = por %p111, %p112
      %p114 = scmp.ne.s32.totalorder %s105, %s106
      %p115 = scmp.eq.s32.totalorder %s32, 0
      %p116 = por %p114, %p115
      %p117 = scmp.ne.s32.totalorder %s105, %s106
      %p118 = scmp.eq.s32.totalorder %s33, 3
      %p119 = por %p117, %p118
      %p121 = scmp.ne.s32.totalorder %s106, %s120
      %p122 = scmp.eq.s32.totalorder %s33, 0
      %p123 = por %p121, %p122
      %s125 = sadd.s32 %s124, 1
      %p128 = scmp.eq.s32.totalorder %s27, 3
      %p129 = scmp.ne.s32.totalorder %s124, %s126
      %p130 = scmp.eq.s32.totalorder %s27, 0
      %p131 = por %p129, %p130
      %p132 = scmp.ne.s32.totalorder %s124, %s126
      %p133 = scmp.eq.s32.totalorder %s32, 3
      %p134 = por %p132, %p133
      %p135 = scmp.ne.s32.totalorder %s126, %s127
      %p136 = scmp.eq.s32.totalorder %s32, 0
      %p137 = por %p135, %p136
      %p138 = scmp.ne.s32.totalorder %s126, %s127
      %p139 = scmp.eq.s32.totalorder %s33, 3
      %p140 = por %p138, %p139
      %p142 = scmp.ne.s32.totalorder %s127, %s141
      %p143 = scmp.eq.s32.totalorder %s33, 0
      %p144 = por %p142, %p143
      %s146 = sadd.s32 %s145, 1
      %p149 = scmp.eq.s32.totalorder %s27, 3
      %p150 = scmp.ne.s32.totalorder %s145, %s147
      %p151 = scmp.eq.s32.totalorder %s27, 0
      %p152 = por %p150, %p151
      %p153 = scmp.ne.s32.totalorder %s145, %s147
      %p154 = scmp.eq.s32.totalorder %s32, 3
      %p155 = por %p153, %p154
      %p156 = scmp.ne.s32.totalorder %s147, %s148
      %p157 = scmp.eq.s32.totalorder %s32, 0
      %p158 = por %p156, %p157
      %p159 = scmp.ne.s32.totalorder %s147, %s148
      %p160 = scmp.eq.s32.totalorder %s33, 3
      %p161 = por %p159, %p160
      %p163 = scmp.ne.s32.totalorder %s148, %s162
      %p164 = scmp.eq.s32.totalorder %s33, 0
      %p165 = por %p163, %p164
      %s167 = sadd.s32 %s166, 1
      %p170 = scmp.eq.s32.totalorder %s27, 3
      %p171 = scmp.ne.s32.totalorder %s166, %s168
      %p172 = scmp.eq.s32.totalorder %s27, 0
      %p173 = por %p171, %p172
      %p174 = scmp.ne.s32.totalorder %s166, %s168
      %p175 = scmp.eq.s32.totalorder %s32, 3
      %p176 = por %p174, %p175
      %p177 = scmp.ne.s32.totalorder %s168, %s169
      %p178 = scmp.eq.s32.totalorder %s32, 0
      %p179 = por %p177, %p178
      %p180 = scmp.ne.s32.totalorder %s168, %s169
      %p181 = scmp.eq.s32.totalorder %s33, 3
      %p182 = por %p180, %p181
      %p184 = scmp.ne.s32.totalorder %s169, %s183
      %p185 = scmp.eq.s32.totalorder %s33, 0
      %p186 = por %p184, %p185
      %s188 = sadd.s32 %s187, 1
      %p191 = scmp.eq.s32.totalorder %s27, 3
      %p192 = scmp.ne.s32.totalorder %s187, %s189
      %p193 = scmp.eq.s32.totalorder %s27, 0
      %p194 = por %p192, %p193
      %p195 = scmp.ne.s32.totalorder %s187, %s189
      %p196 = scmp.eq.s32.totalorder %s32, 3
      %p197 = por %p195, %p196
      %p198 = scmp.ne.s32.totalorder %s189, %s190
      %p199 = scmp.eq.s32.totalorder %s32, 0
      %p200 = por %p198, %p199
      %p201 = scmp.ne.s32.totalorder %s189, %s190
      %p202 = scmp.eq.s32.totalorder %s33, 3
      %p203 = por %p201, %p202
      %p205 = scmp.ne.s32.totalorder %s190, %s204
      %p206 = scmp.eq.s32.totalorder %s33, 0
      %p207 = por %p205, %p206
      %s209 = sadd.s32 %s208, 1
      %p212 = scmp.eq.s32.totalorder %s27, 3
      %p213 = scmp.ne.s32.totalorder %s208, %s210
      %p214 = scmp.eq.s32.totalorder %s27, 0
      %p215 = por %p213, %p214
      %p216 = scmp.ne.s32.totalorder %s208, %s210
      %p217 = scmp.eq.s32.totalorder %s32, 3
      %p218 = por %p216, %p217
      %p219 = scmp.ne.s32.totalorder %s210, %s211
      %p220 = scmp.eq.s32.totalorder %s32, 0
      %p221 = por %p219, %p220
      %p222 = scmp.ne.s32.totalorder %s210, %s211
      %p223 = scmp.eq.s32.totalorder %s33, 3
      %p224 = por %p222, %p223
      %p226 = scmp.ne.s32.totalorder %s211, %s225
      %p227 = scmp.eq.s32.totalorder %s33, 0
      %p228 = por %p226, %p227
      %s230 = sadd.s32 %s229, 1
      %p233 = scmp.eq.s32.totalorder %s27, 3
      %p234 = scmp.ne.s32.totalorder %s229, %s231
      %p235 = scmp.eq.s32.totalorder %s27, 0
      %p236 = por %p234, %p235
      %p237 = scmp.ne.s32.totalorder %s229, %s231
      %p238 = scmp.eq.s32.totalorder %s32, 3
      %p239 = por %p237, %p238
      %p240 = scmp.ne.s32.totalorder %s231, %s232
      %p241 = scmp.eq.s32.totalorder %s32, 0
      %p242 = por %p240, %p241
      %p243 = scmp.ne.s32.totalorder %s231, %s232
      %p244 = scmp.eq.s32.totalorder %s33, 3
      %p245 = por %p243, %p244
      %p247 = scmp.ne.s32.totalorder %s232, %s246
      %p248 = scmp.eq.s32.totalorder %s33, 0
      %p249 = por %p247, %p248
      %s251 = sadd.s32 %s250, 1
      %p254 = scmp.eq.s32.totalorder %s27, 3
      %p255 = scmp.ne.s32.totalorder %s250, %s252
      %p256 = scmp.eq.s32.totalorder %s27, 0
      %p257 = por %p255, %p256
      %p258 = scmp.ne.s32.totalorder %s250, %s252
      %p259 = scmp.eq.s32.totalorder %s32, 3
      %p260 = por %p258, %p259
      %p261 = scmp.ne.s32.totalorder %s252, %s253
      %p262 = scmp.eq.s32.totalorder %s32, 0
      %p263 = por %p261, %p262
      %p264 = scmp.ne.s32.totalorder %s252, %s253
      %p265 = scmp.eq.s32.totalorder %s33, 3
      %p266 = por %p264, %p265
      %p268 = scmp.ne.s32.totalorder %s253, %s267
      %p269 = scmp.eq.s32.totalorder %s33, 0
      %p270 = por %p268, %p269
      %s271 = ssub.s32 %s27, %s34
      %p272 = scmp.eq.s32.totalorder %s271, 0
      %s274 = sadd.s32 %s273, 1
      %s275 = scalar_select %p272, %s273, %s274
      %p278 = pneg %p272
      %p279 = scmp.eq.s32.totalorder %s27, 3
      %p280 = por %p278, %p279
      %p281 = scmp.ne.s32.totalorder %s273, %s276
      %p282 = scmp.eq.s32.totalorder %s27, 0
      %p283 = por %p281, %p282
      %p284 = scmp.ne.s32.totalorder %s273, %s276
      %p285 = scmp.eq.s32.totalorder %s32, 3
      %p286 = por %p284, %p285
      %p287 = scmp.ne.s32.totalorder %s276, %s277
      %p288 = scmp.eq.s32.totalorder %s32, 0
      %p289 = por %p287, %p288
      %p290 = scmp.ne.s32.totalorder %s276, %s277
      %p291 = scmp.eq.s32.totalorder %s33, 3
      %p292 = por %p290, %p291
      %p294 = scmp.ne.s32.totalorder %s277, %s293
      %p295 = scmp.eq.s32.totalorder %s33, 0
      %p296 = por %p294, %p295
      %s297 = ssub.s32 %s27, %s34
      %p298 = scmp.eq.s32.totalorder %s297, 0
      %s300 = sadd.s32 %s299, 1
      %s301 = scalar_select %p298, %s299, %s300
      %p304 = pneg %p298
      %p305 = scmp.eq.s32.totalorder %s27, 3
      %p306 = por %p304, %p305
      %p307 = scmp.ne.s32.totalorder %s299, %s302
      %p308 = scmp.eq.s32.totalorder %s27, 0
      %p309 = por %p307, %p308
      %p310 = scmp.ne.s32.totalorder %s299, %s302
      %p311 = scmp.eq.s32.totalorder %s32, 3
      %p312 = por %p310, %p311
      %p313 = scmp.ne.s32.totalorder %s302, %s303
      %p314 = scmp.eq.s32.totalorder %s32, 0
      %p315 = por %p313, %p314
      %p316 = scmp.ne.s32.totalorder %s302, %s303
      %p317 = scmp.eq.s32.totalorder %s33, 3
      %p318 = por %p316, %p317
      %p320 = scmp.ne.s32.totalorder %s303, %s319
      %p321 = scmp.eq.s32.totalorder %s33, 0
      %p322 = por %p320, %p321
      %s323 = ssub.s32 %s27, %s34
      %p324 = scmp.eq.s32.totalorder %s323, 0
      %s326 = sadd.s32 %s325, 1
      %s327 = scalar_select %p324, %s325, %s326
      %p330 = pneg %p324
      %p331 = scmp.eq.s32.totalorder %s27, 3
      %p332 = por %p330, %p331
      %p333 = scmp.ne.s32.totalorder %s325, %s328
      %p334 = scmp.eq.s32.totalorder %s27, 0
      %p335 = por %p333, %p334
      %p336 = scmp.ne.s32.totalorder %s325, %s328
      %p337 = scmp.eq.s32.totalorder %s32, 3
      %p338 = por %p336, %p337
      %p339 = scmp.ne.s32.totalorder %s328, %s329
      %p340 = scmp.eq.s32.totalorder %s32, 0
      %p341 = por %p339, %p340
      %p342 = scmp.ne.s32.totalorder %s328, %s329
      %p343 = scmp.eq.s32.totalorder %s33, 3
      %p344 = por %p342, %p343
      %p346 = scmp.ne.s32.totalorder %s329, %s345
      %p347 = scmp.eq.s32.totalorder %s33, 0
      %p348 = por %p346, %p347
      %p349 = scmp.le.s32.totalorder 1, %s27
      %p350 = scmp.lt.s32.totalorder %s27, 5
      %p351 = pnand %p349, %p350
      %p352 = pneg %p351
      // Predicated region
      $region9: #{tpu_custom_call.1} parent=5 // pred_check
        _
      $region10: #{tpu_custom_call.1} parent=5 // pred_check_branch
        %354 = sbr.rel (%p351) target = $region12
      $region11: #{tpu_custom_call.1} parent=5 // pred_region
        %s355 = ssub.s32 %s27, 1
        // Predicated region
        $region13: #{tpu_custom_call.1} parent=11 // pred_check
          %p356 = pneg %p74
        $region14: #{tpu_custom_call.1} parent=11 // pred_check_branch
          %358 = sbr.rel (%p356) target = $region16
        $region15: #{tpu_custom_call.1} parent=11 // pred_region
          _
        $region16: #{tpu_custom_call.1} parent=11 // pred_fallthru
          _
        // Predicated region
        $region17: #{tpu_custom_call.1} parent=11 // pred_check
          %p359 = pneg %p95
        $region18: #{tpu_custom_call.1} parent=11 // pred_check_branch
          %361 = sbr.rel (%p359) target = $region20
        $region19: #{tpu_custom_call.1} parent=11 // pred_region
          _
        $region20: #{tpu_custom_call.1} parent=11 // pred_fallthru
          _
        // Predicated region
        $region21: #{tpu_custom_call.1} parent=11 // pred_check
          %p362 = pneg %p116
        $region22: #{tpu_custom_call.1} parent=11 // pred_check_branch
          %364 = sbr.rel (%p362) target = $region24
        $region23: #{tpu_custom_call.1} parent=11 // pred_region
          _
        $region24: #{tpu_custom_call.1} parent=11 // pred_fallthru
          _
        // Predicated region
        $region25: #{tpu_custom_call.1} parent=11 // pred_check
          %p365 = pneg %p137
        $region26: #{tpu_custom_call.1} parent=11 // pred_check_branch
          %367 = sbr.rel (%p365) target = $region28
        $region27: #{tpu_custom_call.1} parent=11 // pred_region
          _
        $region28: #{tpu_custom_call.1} parent=11 // pred_fallthru
          _
        // Predicated region
        $region29: #{tpu_custom_call.1} parent=11 // pred_check
          %p368 = pneg %p158
        $region30: #{tpu_custom_call.1} parent=11 // pred_check_branch
          %370 = sbr.rel (%p368) target = $region32
        $region31: #{tpu_custom_call.1} parent=11 // pred_region
          _
        $region32: #{tpu_custom_call.1} parent=11 // pred_fallthru
          _
        // Predicated region
        $region33: #{tpu_custom_call.1} parent=11 // pred_check
          %p371 = pneg %p179
        $region34: #{tpu_custom_call.1} parent=11 // pred_check_branch
          %373 = sbr.rel (%p371) target = $region36
        $region35: #{tpu_custom_call.1} parent=11 // pred_region
          _
        $region36: #{tpu_custom_call.1} parent=11 // pred_fallthru
          _
        // Predicated region
        $region37: #{tpu_custom_call.1} parent=11 // pred_check
          %p374 = pneg %p200
        $region38: #{tpu_custom_call.1} parent=11 // pred_check_branch
          %376 = sbr.rel (%p374) target = $region40
        $region39: #{tpu_custom_call.1} parent=11 // pred_region
          _
        $region40: #{tpu_custom_call.1} parent=11 // pred_fallthru
          _
        // Predicated region
        $region41: #{tpu_custom_call.1} parent=11 // pred_check
          %p377 = pneg %p221
        $region42: #{tpu_custom_call.1} parent=11 // pred_check_branch
          %379 = sbr.rel (%p377) target = $region44
        $region43: #{tpu_custom_call.1} parent=11 // pred_region
          _
        $region44: #{tpu_custom_call.1} parent=11 // pred_fallthru
          _
        // Predicated region
        $region45: #{tpu_custom_call.1} parent=11 // pred_check
          %p380 = pneg %p242
        $region46: #{tpu_custom_call.1} parent=11 // pred_check_branch
          %382 = sbr.rel (%p380) target = $region48
        $region47: #{tpu_custom_call.1} parent=11 // pred_region
          %s384 = ssub.s32 3072, 3072
          %385 = vsyncadd [#allocation3], %s384
          %s386 = sshll.u32 [#allocation2], 4
          %s387 = int_to_ptr.vmem [resolvable:$true] %s386
          %392 = dma.hbm_to_vmem [thread:$0]  %s9, 3072, %s387, [#allocation3], 192, 192, 12
        $region48: #{tpu_custom_call.1} parent=11 // pred_fallthru
          _
        // Predicated region
        $region49: #{tpu_custom_call.1} parent=11 // pred_check
          %p393 = pneg %p263
        $region50: #{tpu_custom_call.1} parent=11 // pred_check_branch
          %395 = sbr.rel (%p393) target = $region52
        $region51: #{tpu_custom_call.1} parent=11 // pred_region
          _
        $region52: #{tpu_custom_call.1} parent=11 // pred_fallthru
          _
      $region12: #{tpu_custom_call.1} parent=5 // pred_fallthru
        _
      %p396 = scmp.lt.s32.totalorder %s27, 4
      // Predicated region
      $region53: #{tpu_custom_call.1} parent=5 // pred_check
        %p397 = pneg %p396
      $region54: #{tpu_custom_call.1} parent=5 // pred_check_branch
        %399 = sbr.rel (%p397) target = $region56
      $region55: #{tpu_custom_call.1} parent=5 // pred_region
        // Predicated region
        $region57: #{tpu_custom_call.1} parent=55 // pred_check
          %p400 = pneg %p47
        $region58: #{tpu_custom_call.1} parent=55 // pred_check_branch
          %402 = sbr.rel (%p400) target = $region60
        $region59: #{tpu_custom_call.1} parent=55 // pred_region
          %s403 = smul.u32 16, %s27
          %p404 = scmp.lt.s32.totalorder %s403, 63
          %s405 = scalar_select %p404, %s403, 63
          %s406 = smul.addr %s405, 8
          %s407 = scalar_lea.vmem %s0, %s406
          %s408 = smul.u32 16, %s27
        $region60: #{tpu_custom_call.1} parent=55 // pred_fallthru
          _
      $region56: #{tpu_custom_call.1} parent=5 // pred_fallthru
        _
      %p409 = scmp.le.s32.totalorder 1, %s27
      %p410 = scmp.lt.s32.totalorder %s27, 5
      %p411 = pnand %p409, %p410
      %p412 = pneg %p411
      // Predicated region
      $region61: #{tpu_custom_call.1} parent=5 // pred_check
        _
      $region62: #{tpu_custom_call.1} parent=5 // pred_check_branch
        %414 = sbr.rel (%p411) target = $region64
      $region63: #{tpu_custom_call.1} parent=5 // pred_region
        %s415 = ssub.s32 %s27, 1
        // Predicated region
        $region65: #{tpu_custom_call.1} parent=63 // pred_check
          %p416 = pneg %p242
        $region66: #{tpu_custom_call.1} parent=63 // pred_check_branch
          %418 = sbr.rel (%p416) target = $region68
        $region67: #{tpu_custom_call.1} parent=63 // pred_region
          %419 = dma.done [#allocation3], 3072
        $region68: #{tpu_custom_call.1} parent=63 // pred_fallthru
          _
        %s420 = smul.u32 16, %s32
        %p421 = scmp.lt.s32.totalorder %s420, 63
        %s422 = scalar_select %p421, %s420, 63
        %s423 = smul.addr %s422, 8
        %s424 = scalar_lea.vmem %s0, %s423
        %p425 = pneg %p53
        %p426 = pneg %p50
        %p427 = pneg %p74
        %p428 = pneg %p71
        %p429 = pneg %p95
        %p430 = pneg %p92
        %p431 = pneg %p116
        %p432 = pneg %p113
        %p433 = pneg %p137
        %p434 = pneg %p134
        %p435 = pneg %p158
        %p436 = pneg %p155
        %p437 = pneg %p179
        %p438 = pneg %p176
        %p439 = pneg %p200
        %p440 = pneg %p197
        %p441 = pneg %p221
        %p442 = pneg %p218
        %p443 = pneg %p242
        %p444 = pneg %p239
        %p445 = pneg %p263
        %p446 = pneg %p260
        %p447 = pneg %p289
        %p448 = pneg %p286
        %s449 = sand.u32 %s276, 1
        %s450 = scalar_lea.sflag [#allocation4], %s449
        %s451 = sand.u32 %s276, 1
        %s452 = smul.addr %s451, 64
        %s453 = scalar_lea.vmem [#allocation5], %s452
        %p454 = pneg %p315
        %p455 = pneg %p312
        %s456 = sand.u32 %s32, 1
        %s457 = scalar_lea.sflag [#allocation7], %s456
        %s458 = sand.u32 %s302, 1
        %s459 = smul.addr %s458, 64
        %s460 = scalar_lea.vmem [#allocation6], %s459
        %p461 = pneg %p341
        %p462 = pneg %p338
        %s463 = sand.u32 %s32, 1
        %s464 = scalar_lea.sflag [#allocation7], %s463
        %s465 = sand.u32 %s328, 1
        %s466 = smul.addr %s465, 64
        %s467 = scalar_lea.vmem [#allocation8], %s466
        %s468 = smul.u32 16, %s32
        %p469 = scmp.lt.s32.totalorder %s468, 63
        %s470 = scalar_select %p469, %s468, 63
        %s471 = smul.addr %s470, 8
        %s472 = scalar_lea.vmem %s0, %s471
        %s473 = smul.u32 16, %s32
        %s474 = smul.u32 16, %s32
        %s475 = smul.u32 16, %s32
        %v477 = vld [vmem:[%s472] sm:$0xff]
        %v478 = vld [vmem:[%s472 + $0x8] sm:$0xff]
        %v479 = vld [vmem:[%s472 + $0x10] sm:$0xff]
        %v480 = vld [vmem:[%s472 + $0x18] sm:$0xff]
        %v481 = vld [vmem:[%s472 + $0x20] sm:$0xff]
        %v482 = vld [vmem:[%s472 + $0x28] sm:$0xff]
        %v483 = vld [vmem:[%s472 + $0x30] sm:$0xff]
        %v484 = vld [vmem:[%s472 + $0x38] sm:$0xff]
        %v485 = vld [vmem:[%s472 + $0x40] sm:$0xff]
        %v486 = vld [vmem:[%s472 + $0x48] sm:$0xff]
        %v487 = vld [vmem:[%s472 + $0x50] sm:$0xff]
        %v488 = vld [vmem:[%s472 + $0x58] sm:$0xff]
        %v489 = vld [vmem:[%s472 + $0x60] sm:$0xff]
        %v490 = vld [vmem:[%s472 + $0x68] sm:$0xff]
        %v491 = vld [vmem:[%s472 + $0x70] sm:$0xff]
        %v492 = vld [vmem:[%s472 + $0x78] sm:$0xff]
        %v493 = vpack.c.bf16 %v478, %v477
        %v494 = vpack.c.bf16 %v480, %v479
        %v495 = vpack.c.bf16 %v482, %v481
        %v496 = vpack.c.bf16 %v484, %v483
        %v497 = vpack.c.bf16 %v486, %v485
        %v498 = vpack.c.bf16 %v488, %v487
        %v499 = vpack.c.bf16 %v490, %v489
        %v500 = vpack.c.bf16 %v492, %v491
        %v501 = vld [vmem:[%s1] sm:$0xff]
        %v502 = vld [vmem:[%s1 + $0x8] sm:$0xff]
        %v503 = vld [vmem:[%s1 + $0x10] sm:$0xff]
        %v504 = vld [vmem:[%s1 + $0x18] sm:$0xff]
        %v505 = vld [vmem:[%s2] sm:$0x3]
        %v507 = vlaneseq
        %v508 = vshrl.u32 %v507, 7
        %v509 = vsub.s32 0, %v508
        %v510 = vrot.slane %v505, %v509
        %v511 = vlaneseq
        %v512 = vshrl.u32 %v511, 7
        %v513 = vsub.s32 1, %v512
        %v514 = vrot.slane %v505, %v513
        %v521 = vunpack.c.l.b16 %v501
        %v522 = vunpack.c.h.b16 %v501
        %v523 = vunpack.c.l.b16 %v502
        %v524 = vunpack.c.h.b16 %v502
        %v525 = vunpack.c.l.b16 %v503
        %v526 = vunpack.c.h.b16 %v503
        %v527 = vunpack.c.l.b16 %v504
        %v528 = vunpack.c.h.b16 %v504
        %v529 = vpack.c.b16 %v523, %v521
        %v530 = vpack.c.b16 %v524, %v522
        %v531 = vpack.c.b16 %v527, %v525
        %v532 = vpack.c.b16 %v528, %v526
        %vm537 = vcmask 261120
        %v539 = vsel %vm537, %v493, 0
        %v542 = vsel %vm537, %v494, 0
        %v545 = vsel %vm537, %v495, 0
        %v548 = vsel %vm537, %v496, 0
        %v551 = vsel %vm537, %v497, 0
        %v554 = vsel %vm537, %v498, 0
        %v557 = vsel %vm537, %v499, 0
        %v560 = vsel %vm537, %v500, 0
        %562 = vmatprep.subr.bf16.mxu0 0
        %563 = vmatpush1.bf16.msra.mxu0 0
        %564 = vmatprep.subr.bf16.mxu0 0
        %565 = vmatpush1.bf16.msra.mxu0 0
        %566 = vmatprep.subr.bf16.mxu0 0
        %567 = vmatpush1.bf16.msra.mxu0 0
        %568 = vmatprep.subr.bf16.mxu0 0
        %569 = vmatpush1.bf16.msra.mxu0 0
        %570 = vmatprep.subr.bf16.mxu0 0
        %571 = vmatpush1.bf16.msra.mxu0 0
        %572 = vmatprep.subr.bf16.mxu0 0
        %573 = vmatpush1.bf16.msra.mxu0 0
        %574 = vmatprep.subr.bf16.mxu0 %v532
        %575 = vmatpush1.bf16.msra.mxu0 %v531
        %576 = vmatprep.subr.bf16.mxu0 %v530
        %577 = vmatpush1.bf16.msra.mxu0 %v529
        %578 = vmatprep.subr.bf16.mxu0 0
        %579 = vmatpush2.bf16.msra.mxu0 0
        %580 = vmatprep.subr.bf16.mxu0 0
        %581 = vmatpush2.bf16.msra.mxu0 0
        %582 = vmatprep.subr.bf16.mxu0 0
        %583 = vmatpush2.bf16.msra.mxu0 0
        %584 = vmatprep.subr.bf16.mxu0 0
        %585 = vmatpush2.bf16.msra.mxu0 0
        %586 = vmatprep.subr.bf16.mxu0 0
        %587 = vmatpush2.bf16.msra.mxu0 0
        %588 = vmatprep.subr.bf16.mxu0 0
        %589 = vmatpush2.bf16.msra.mxu0 0
        %590 = vmatprep.subr.bf16.mxu0 0
        %591 = vmatpush2.bf16.msra.mxu0 0
        %592 = vmatprep.subr.bf16.mxu0 0
        %593 = vmatpush2.bf16.msra.mxu0 0
        %594 = vmatprep.mubr.bf16.mxu0 0
        %595 = vmatmul.mubr.bf16.gmra.mxu0 %v539
        %v596 = vpop.f32.mrf.mxu0
        %v597 = vadd.f32 %v510, %v596
        %v598 = vpop.f32.mrf.mxu0
        %v599 = vadd.f32 %v514, %v598
        %v600 = vpop.f32.mrf.mxu0
        %v601 = vadd.f32 %v510, %v600
        %v602 = vpop.f32.mrf.mxu0
        %v603 = vadd.f32 %v514, %v602
        %604 = vmatprep.mubr.bf16.mxu0 0
        %605 = vmatmul.mubr.bf16.gmra.mxu0 %v542
        %v606 = vpop.f32.mrf.mxu0
        %v607 = vadd.f32 %v510, %v606
        %v608 = vpop.f32.mrf.mxu0
        %v609 = vadd.f32 %v514, %v608
        %v610 = vpop.f32.mrf.mxu0
        %v611 = vadd.f32 %v510, %v610
        %v612 = vpop.f32.mrf.mxu0
        %v613 = vadd.f32 %v514, %v612
        %614 = vmatprep.mubr.bf16.mxu0 0
        %615 = vmatmul.mubr.bf16.gmra.mxu0 %v545
        %v616 = vpop.f32.mrf.mxu0
        %v617 = vadd.f32 %v510, %v616
        %v618 = vpop.f32.mrf.mxu0
        %v619 = vadd.f32 %v514, %v618
        %v620 = vpop.f32.mrf.mxu0
        %v621 = vadd.f32 %v510, %v620
        %v622 = vpop.f32.mrf.mxu0
        %v623 = vadd.f32 %v514, %v622
        %624 = vmatprep.mubr.bf16.mxu0 0
        %625 = vmatmul.mubr.bf16.gmra.mxu0 %v548
        %v626 = vpop.f32.mrf.mxu0
        %v627 = vadd.f32 %v510, %v626
        %v628 = vpop.f32.mrf.mxu0
        %v629 = vadd.f32 %v514, %v628
        %v630 = vpop.f32.mrf.mxu0
        %v631 = vadd.f32 %v510, %v630
        %v632 = vpop.f32.mrf.mxu0
        %v633 = vadd.f32 %v514, %v632
        %634 = vmatprep.mubr.bf16.mxu0 0
        %635 = vmatmul.mubr.bf16.gmra.mxu0 %v551
        %v636 = vpop.f32.mrf.mxu0
        %v637 = vadd.f32 %v510, %v636
        %v638 = vpop.f32.mrf.mxu0
        %v639 = vadd.f32 %v514, %v638
        %v640 = vpop.f32.mrf.mxu0
        %v641 = vadd.f32 %v510, %v640
        %v642 = vpop.f32.mrf.mxu0
        %v643 = vadd.f32 %v514, %v642
        %644 = vmatprep.mubr.bf16.mxu0 0
        %645 = vmatmul.mubr.bf16.gmra.mxu0 %v554
        %v646 = vpop.f32.mrf.mxu0
        %v647 = vadd.f32 %v510, %v646
        %v648 = vpop.f32.mrf.mxu0
        %v649 = vadd.f32 %v514, %v648
        %v650 = vpop.f32.mrf.mxu0
        %v651 = vadd.f32 %v510, %v650
        %v652 = vpop.f32.mrf.mxu0
        %v653 = vadd.f32 %v514, %v652
        %654 = vmatprep.mubr.bf16.mxu0 0
        %655 = vmatmul.mubr.bf16.gmra.mxu0 %v557
        %v656 = vpop.f32.mrf.mxu0
        %v657 = vadd.f32 %v510, %v656
        %v658 = vpop.f32.mrf.mxu0
        %v659 = vadd.f32 %v514, %v658
        %v660 = vpop.f32.mrf.mxu0
        %v661 = vadd.f32 %v510, %v660
        %v662 = vpop.f32.mrf.mxu0
        %v663 = vadd.f32 %v514, %v662
        %664 = vmatprep.mubr.bf16.mxu0 0
        %665 = vmatmul.mubr.bf16.gmra.mxu0 %v560
        %v666 = vpop.f32.mrf.mxu0
        %v667 = vadd.f32 %v510, %v666
        %v668 = vpop.f32.mrf.mxu0
        %v669 = vadd.f32 %v514, %v668
        %v670 = vpop.f32.mrf.mxu0
        %v671 = vadd.f32 %v510, %v670
        %v672 = vpop.f32.mrf.mxu0
        %v673 = vadd.f32 %v514, %v672
        %674 = vdwg.mxu0
        %v675 = vmax.f32 %v597, 0.0
        %v676 = vmax.f32 %v599, 0.0
        %v677 = vmax.f32 %v601, 0.0
        %v678 = vmax.f32 %v603, 0.0
        %v679 = vmax.f32 %v607, 0.0
        %v680 = vmax.f32 %v609, 0.0
        %v681 = vmax.f32 %v611, 0.0
        %v682 = vmax.f32 %v613, 0.0
        %v683 = vmax.f32 %v617, 0.0
        %v684 = vmax.f32 %v619, 0.0
        %v685 = vmax.f32 %v621, 0.0
        %v686 = vmax.f32 %v623, 0.0
        %v687 = vmax.f32 %v627, 0.0
        %v688 = vmax.f32 %v629, 0.0
        %v689 = vmax.f32 %v631, 0.0
        %v690 = vmax.f32 %v633, 0.0
        %v691 = vmax.f32 %v637, 0.0
        %v692 = vmax.f32 %v639, 0.0
        %v693 = vmax.f32 %v641, 0.0
        %v694 = vmax.f32 %v643, 0.0
        %v695 = vmax.f32 %v647, 0.0
        %v696 = vmax.f32 %v649, 0.0
        %v697 = vmax.f32 %v651, 0.0
        %v698 = vmax.f32 %v653, 0.0
        %v699 = vmax.f32 %v657, 0.0
        %v700 = vmax.f32 %v659, 0.0
        %v701 = vmax.f32 %v661, 0.0
        %v702 = vmax.f32 %v663, 0.0
        %v703 = vmax.f32 %v667, 0.0
        %v704 = vmax.f32 %v669, 0.0
        %v705 = vmax.f32 %v671, 0.0
        %v706 = vmax.f32 %v673, 0.0
        %v707 = vpack.c.bf16 %v677, %v675
        %v708 = vpack.c.bf16 %v678, %v676
        %v709 = vpack.c.bf16 %v681, %v679
        %v710 = vpack.c.bf16 %v682, %v680
        %v711 = vpack.c.bf16 %v685, %v683
        %v712 = vpack.c.bf16 %v686, %v684
        %v713 = vpack.c.bf16 %v689, %v687
        %v714 = vpack.c.bf16 %v690, %v688
        %v715 = vpack.c.bf16 %v693, %v691
        %v716 = vpack.c.bf16 %v694, %v692
        %v717 = vpack.c.bf16 %v697, %v695
        %v718 = vpack.c.bf16 %v698, %v696
        %v719 = vpack.c.bf16 %v701, %v699
        %v720 = vpack.c.bf16 %v702, %v700
        %v721 = vpack.c.bf16 %v705, %v703
        %v722 = vpack.c.bf16 %v706, %v704
        %v723 = vld [vmem:[%s3] sm:$0xff]
        %v724 = vld [vmem:[%s3 + $0x8] sm:$0xff]
        %v725 = vld [vmem:[%s3 + $0x10] sm:$0xff]
        %v726 = vld [vmem:[%s3 + $0x18] sm:$0xff]
        %v727 = vld [vmem:[%s3 + $0x20] sm:$0xff]
        %v728 = vld [vmem:[%s3 + $0x28] sm:$0xff]
        %v729 = vld [vmem:[%s3 + $0x30] sm:$0xff]
        %v730 = vld [vmem:[%s3 + $0x38] sm:$0xff]
        %v731 = vld [vmem:[%s3 + $0x40] sm:$0xff]
        %v732 = vld [vmem:[%s3 + $0x48] sm:$0xff]
        %v733 = vld [vmem:[%s3 + $0x50] sm:$0xff]
        %v734 = vld [vmem:[%s3 + $0x58] sm:$0xff]
        %v735 = vld [vmem:[%s3 + $0x60] sm:$0xff]
        %v736 = vld [vmem:[%s3 + $0x68] sm:$0xff]
        %v737 = vld [vmem:[%s3 + $0x70] sm:$0xff]
        %v738 = vld [vmem:[%s3 + $0x78] sm:$0xff]
        %v739 = vld [vmem:[%s3 + $0x80] sm:$0xff]
        %v740 = vld [vmem:[%s3 + $0x88] sm:$0xff]
        %v741 = vld [vmem:[%s3 + $0x90] sm:$0xff]
        %v742 = vld [vmem:[%s3 + $0x98] sm:$0xff]
        %v743 = vld [vmem:[%s3 + $0xa0] sm:$0xff]
        %v744 = vld [vmem:[%s3 + $0xa8] sm:$0xff]
        %v745 = vld [vmem:[%s3 + $0xb0] sm:$0xff]
        %v746 = vld [vmem:[%s3 + $0xb8] sm:$0xff]
        %v747 = vld [vmem:[%s3 + $0xc0] sm:$0xff]
        %v748 = vld [vmem:[%s3 + $0xc8] sm:$0xff]
        %v749 = vld [vmem:[%s3 + $0xd0] sm:$0xff]
        %v750 = vld [vmem:[%s3 + $0xd8] sm:$0xff]
        %v751 = vld [vmem:[%s3 + $0xe0] sm:$0xff]
        %v752 = vld [vmem:[%s3 + $0xe8] sm:$0xff]
        %v753 = vld [vmem:[%s3 + $0xf0] sm:$0xff]
        %v754 = vld [vmem:[%s3 + $0xf8] sm:$0xff]
        %v755 = vld [vmem:[%s4] sm:$0x3]
        %v757 = vlaneseq
        %v758 = vshrl.u32 %v757, 7
        %v759 = vsub.s32 0, %v758
        %v760 = vrot.slane %v755, %v759
        %v761 = vlaneseq
        %v762 = vshrl.u32 %v761, 7
        %v763 = vsub.s32 1, %v762
        %v764 = vrot.slane %v755, %v763
        %v799 = vunpack.c.l.b16 %v723
        %v800 = vunpack.c.h.b16 %v723
        %v801 = vunpack.c.l.b16 %v724
        %v802 = vunpack.c.h.b16 %v724
        %v803 = vunpack.c.l.b16 %v725
        %v804 = vunpack.c.h.b16 %v725
        %v805 = vunpack.c.l.b16 %v726
        %v806 = vunpack.c.h.b16 %v726
        %v807 = vunpack.c.l.b16 %v727
        %v808 = vunpack.c.h.b16 %v727
        %v809 = vunpack.c.l.b16 %v728
        %v810 = vunpack.c.h.b16 %v728
        %v811 = vunpack.c.l.b16 %v729
        %v812 = vunpack.c.h.b16 %v729
        %v813 = vunpack.c.l.b16 %v730
        %v814 = vunpack.c.h.b16 %v730
        %v815 = vunpack.c.l.b16 %v731
        %v816 = vunpack.c.h.b16 %v731
        %v817 = vunpack.c.l.b16 %v732
        %v818 = vunpack.c.h.b16 %v732
        %v819 = vunpack.c.l.b16 %v733
        %v820 = vunpack.c.h.b16 %v733
        %v821 = vunpack.c.l.b16 %v734
        %v822 = vunpack.c.h.b16 %v734
        %v823 = vunpack.c.l.b16 %v735
        %v824 = vunpack.c.h.b16 %v735
        %v825 = vunpack.c.l.b16 %v736
        %v826 = vunpack.c.h.b16 %v736
        %v827 = vunpack.c.l.b16 %v737
        %v828 = vunpack.c.h.b16 %v737
        %v829 = vunpack.c.l.b16 %v738
        %v830 = vunpack.c.h.b16 %v738
        %v831 = vunpack.c.l.b16 %v739
        %v832 = vunpack.c.h.b16 %v739
        %v833 = vunpack.c.l.b16 %v740
        %v834 = vunpack.c.h.b16 %v740
        %v835 = vunpack.c.l.b16 %v741
        %v836 = vunpack.c.h.b16 %v741
        %v837 = vunpack.c.l.b16 %v742
        %v838 = vunpack.c.h.b16 %v742
        %v839 = vunpack.c.l.b16 %v743
        %v840 = vunpack.c.h.b16 %v743
        %v841 = vunpack.c.l.b16 %v744
        %v842 = vunpack.c.h.b16 %v744
        %v843 = vunpack.c.l.b16 %v745
        %v844 = vunpack.c.h.b16 %v745
        %v845 = vunpack.c.l.b16 %v746
        %v846 = vunpack.c.h.b16 %v746
        %v847 = vunpack.c.l.b16 %v747
        %v848 = vunpack.c.h.b16 %v747
        %v849 = vunpack.c.l.b16 %v748
        %v850 = vunpack.c.h.b16 %v748
        %v851 = vunpack.c.l.b16 %v749
        %v852 = vunpack.c.h.b16 %v749
        %v853 = vunpack.c.l.b16 %v750
        %v854 = vunpack.c.h.b16 %v750
        %v855 = vunpack.c.l.b16 %v751
        %v856 = vunpack.c.h.b16 %v751
        %v857 = vunpack.c.l.b16 %v752
        %v858 = vunpack.c.h.b16 %v752
        %v859 = vunpack.c.l.b16 %v753
        %v860 = vunpack.c.h.b16 %v753
        %v861 = vunpack.c.l.b16 %v754
        %v862 = vunpack.c.h.b16 %v754
        %v863 = vpack.c.b16 %v801, %v799
        %v864 = vpack.c.b16 %v802, %v800
        %v865 = vpack.c.b16 %v805, %v803
        %v866 = vpack.c.b16 %v806, %v804
        %v867 = vpack.c.b16 %v809, %v807
        %v868 = vpack.c.b16 %v810, %v808
        %v869 = vpack.c.b16 %v813, %v811
        %v870 = vpack.c.b16 %v814, %v812
        %v871 = vpack.c.b16 %v817, %v815
        %v872 = vpack.c.b16 %v818, %v816
        %v873 = vpack.c.b16 %v821, %v819
        %v874 = vpack.c.b16 %v822, %v820
        %v875 = vpack.c.b16 %v825, %v823
        %v876 = vpack.c.b16 %v826, %v824
        %v877 = vpack.c.b16 %v829, %v827
        %v878 = vpack.c.b16 %v830, %v828
        %v879 = vpack.c.b16 %v833, %v831
        %v880 = vpack.c.b16 %v834, %v832
        %v881 = vpack.c.b16 %v837, %v835
        %v882 = vpack.c.b16 %v838, %v836
        %v883 = vpack.c.b16 %v841, %v839
        %v884 = vpack.c.b16 %v842, %v840
        %v885 = vpack.c.b16 %v845, %v843
        %v886 = vpack.c.b16 %v846, %v844
        %v887 = vpack.c.b16 %v849, %v847
        %v888 = vpack.c.b16 %v850, %v848
        %v889 = vpack.c.b16 %v853, %v851
        %v890 = vpack.c.b16 %v854, %v852
        %v891 = vpack.c.b16 %v857, %v855
        %v892 = vpack.c.b16 %v858, %v856
        %v893 = vpack.c.b16 %v861, %v859
        %v894 = vpack.c.b16 %v862, %v860
        %927 = vmatprep.subr.bf16.mxu0 %v878
        %928 = vmatpush1.bf16.msra.mxu0 %v877
        %929 = vmatprep.subr.bf16.mxu0 %v876
        %930 = vmatpush1.bf16.msra.mxu0 %v875
        %931 = vmatprep.subr.bf16.mxu0 %v874
        %932 = vmatpush1.bf16.msra.mxu0 %v873
        %933 = vmatprep.subr.bf16.mxu0 %v872
        %934 = vmatpush1.bf16.msra.mxu0 %v871
        %935 = vmatprep.subr.bf16.mxu0 %v870
        %936 = vmatpush1.bf16.msra.mxu0 %v869
        %937 = vmatprep.subr.bf16.mxu0 %v868
        %938 = vmatpush1.bf16.msra.mxu0 %v867
        %939 = vmatprep.subr.bf16.mxu0 %v866
        %940 = vmatpush1.bf16.msra.mxu0 %v865
        %941 = vmatprep.subr.bf16.mxu0 %v864
        %942 = vmatpush1.bf16.msra.mxu0 %v863
        %943 = vmatprep.subr.bf16.mxu0 %v894
        %944 = vmatpush2.bf16.msra.mxu0 %v893
        %945 = vmatprep.subr.bf16.mxu0 %v892
        %946 = vmatpush2.bf16.msra.mxu0 %v891
        %947 = vmatprep.subr.bf16.mxu0 %v890
        %948 = vmatpush2.bf16.msra.mxu0 %v889
        %949 = vmatprep.subr.bf16.mxu0 %v888
        %950 = vmatpush2.bf16.msra.mxu0 %v887
        %951 = vmatprep.subr.bf16.mxu0 %v886
        %952 = vmatpush2.bf16.msra.mxu0 %v885
        %953 = vmatprep.subr.bf16.mxu0 %v884
        %954 = vmatpush2.bf16.msra.mxu0 %v883
        %955 = vmatprep.subr.bf16.mxu0 %v882
        %956 = vmatpush2.bf16.msra.mxu0 %v881
        %957 = vmatprep.subr.bf16.mxu0 %v880
        %958 = vmatpush2.bf16.msra.mxu0 %v879
        %959 = vmatprep.mubr.bf16.mxu0 %v708
        %960 = vmatmul.mubr.bf16.gmra.mxu0 %v707
        %v961 = vpop.f32.mrf.mxu0
        %v962 = vadd.f32 %v760, %v961
        %v963 = vpop.f32.mrf.mxu0
        %v964 = vadd.f32 %v764, %v963
        %v965 = vpop.f32.mrf.mxu0
        %v966 = vadd.f32 %v760, %v965
        %v967 = vpop.f32.mrf.mxu0
        %v968 = vadd.f32 %v764, %v967
        %969 = vmatprep.mubr.bf16.mxu0 %v710
        %970 = vmatmul.mubr.bf16.gmra.mxu0 %v709
        %v971 = vpop.f32.mrf.mxu0
        %v972 = vadd.f32 %v760, %v971
        %v973 = vpop.f32.mrf.mxu0
        %v974 = vadd.f32 %v764, %v973
        %v975 = vpop.f32.mrf.mxu0
        %v976 = vadd.f32 %v760, %v975
        %v977 = vpop.f32.mrf.mxu0
        %v978 = vadd.f32 %v764, %v977
        %979 = vmatprep.mubr.bf16.mxu0 %v712
        %980 = vmatmul.mubr.bf16.gmra.mxu0 %v711
        %v981 = vpop.f32.mrf.mxu0
        %v982 = vadd.f32 %v760, %v981
        %v983 = vpop.f32.mrf.mxu0
        %v984 = vadd.f32 %v764, %v983
        %v985 = vpop.f32.mrf.mxu0
        %v986 = vadd.f32 %v760, %v985
        %v987 = vpop.f32.mrf.mxu0
        %v988 = vadd.f32 %v764, %v987
        %989 = vmatprep.mubr.bf16.mxu0 %v714
        %990 = vmatmul.mubr.bf16.gmra.mxu0 %v713
        %v991 = vpop.f32.mrf.mxu0
        %v992 = vadd.f32 %v760, %v991
        %v993 = vpop.f32.mrf.mxu0
        %v994 = vadd.f32 %v764, %v993
        %v995 = vpop.f32.mrf.mxu0
        %v996 = vadd.f32 %v760, %v995
        %v997 = vpop.f32.mrf.mxu0
        %v998 = vadd.f32 %v764, %v997
        %999 = vmatprep.mubr.bf16.mxu0 %v716
        %1000 = vmatmul.mubr.bf16.gmra.mxu0 %v715
        %v1001 = vpop.f32.mrf.mxu0
        %v1002 = vadd.f32 %v760, %v1001
        %v1003 = vpop.f32.mrf.mxu0
        %v1004 = vadd.f32 %v764, %v1003
        %v1005 = vpop.f32.mrf.mxu0
        %v1006 = vadd.f32 %v760, %v1005
        %v1007 = vpop.f32.mrf.mxu0
        %v1008 = vadd.f32 %v764, %v1007
        %1009 = vmatprep.mubr.bf16.mxu0 %v718
        %1010 = vmatmul.mubr.bf16.gmra.mxu0 %v717
        %v1011 = vpop.f32.mrf.mxu0
        %v1012 = vadd.f32 %v760, %v1011
        %v1013 = vpop.f32.mrf.mxu0
        %v1014 = vadd.f32 %v764, %v1013
        %v1015 = vpop.f32.mrf.mxu0
        %v1016 = vadd.f32 %v760, %v1015
        %v1017 = vpop.f32.mrf.mxu0
        %v1018 = vadd.f32 %v764, %v1017
        %1019 = vmatprep.mubr.bf16.mxu0 %v720
        %1020 = vmatmul.mubr.bf16.gmra.mxu0 %v719
        %v1021 = vpop.f32.mrf.mxu0
        %v1022 = vadd.f32 %v760, %v1021
        %v1023 = vpop.f32.mrf.mxu0
        %v1024 = vadd.f32 %v764, %v1023
        %v1025 = vpop.f32.mrf.mxu0
        %v1026 = vadd.f32 %v760, %v1025
        %v1027 = vpop.f32.mrf.mxu0
        %v1028 = vadd.f32 %v764, %v1027
        %1029 = vmatprep.mubr.bf16.mxu0 %v722
        %1030 = vmatmul.mubr.bf16.gmra.mxu0 %v721
        %v1031 = vpop.f32.mrf.mxu0
        %v1032 = vadd.f32 %v760, %v1031
        %v1033 = vpop.f32.mrf.mxu0
        %v1034 = vadd.f32 %v764, %v1033
        %v1035 = vpop.f32.mrf.mxu0
        %v1036 = vadd.f32 %v760, %v1035
        %v1037 = vpop.f32.mrf.mxu0
        %v1038 = vadd.f32 %v764, %v1037
        %1039 = vdwg.mxu0
        %v1040 = vmax.f32 %v962, 0.0
        %v1041 = vmax.f32 %v964, 0.0
        %v1042 = vmax.f32 %v966, 0.0
        %v1043 = vmax.f32 %v968, 0.0
        %v1044 = vmax.f32 %v972, 0.0
        %v1045 = vmax.f32 %v974, 0.0
        %v1046 = vmax.f32 %v976, 0.0
        %v1047 = vmax.f32 %v978, 0.0
        %v1048 = vmax.f32 %v982, 0.0
        %v1049 = vmax.f32 %v984, 0.0
        %v1050 = vmax.f32 %v986, 0.0
        %v1051 = vmax.f32 %v988, 0.0
        %v1052 = vmax.f32 %v992, 0.0
        %v1053 = vmax.f32 %v994, 0.0
        %v1054 = vmax.f32 %v996, 0.0
        %v1055 = vmax.f32 %v998, 0.0
        %v1056 = vmax.f32 %v1002, 0.0
        %v1057 = vmax.f32 %v1004, 0.0
        %v1058 = vmax.f32 %v1006, 0.0
        %v1059 = vmax.f32 %v1008, 0.0
        %v1060 = vmax.f32 %v1012, 0.0
        %v1061 = vmax.f32 %v1014, 0.0
        %v1062 = vmax.f32 %v1016, 0.0
        %v1063 = vmax.f32 %v1018, 0.0
        %v1064 = vmax.f32 %v1022, 0.0
        %v1065 = vmax.f32 %v1024, 0.0
        %v1066 = vmax.f32 %v1026, 0.0
        %v1067 = vmax.f32 %v1028, 0.0
        %v1068 = vmax.f32 %v1032, 0.0
        %v1069 = vmax.f32 %v1034, 0.0
        %v1070 = vmax.f32 %v1036, 0.0
        %v1071 = vmax.f32 %v1038, 0.0
        %v1072 = vpack.c.bf16 %v1042, %v1040
        %v1073 = vpack.c.bf16 %v1043, %v1041
        %v1074 = vpack.c.bf16 %v1046, %v1044
        %v1075 = vpack.c.bf16 %v1047, %v1045
        %v1076 = vpack.c.bf16 %v1050, %v1048
        %v1077 = vpack.c.bf16 %v1051, %v1049
        %v1078 = vpack.c.bf16 %v1054, %v1052
        %v1079 = vpack.c.bf16 %v1055, %v1053
        %v1080 = vpack.c.bf16 %v1058, %v1056
        %v1081 = vpack.c.bf16 %v1059, %v1057
        %v1082 = vpack.c.bf16 %v1062, %v1060
        %v1083 = vpack.c.bf16 %v1063, %v1061
        %v1084 = vpack.c.bf16 %v1066, %v1064
        %v1085 = vpack.c.bf16 %v1067, %v1065
        %v1086 = vpack.c.bf16 %v1070, %v1068
        %v1087 = vpack.c.bf16 %v1071, %v1069
        %v1088 = vld [vmem:[%s5] sm:$0xff]
        %v1089 = vld [vmem:[%s5 + $0x8] sm:$0xff]
        %v1090 = vld [vmem:[%s5 + $0x10] sm:$0xff]
        %v1091 = vld [vmem:[%s5 + $0x18] sm:$0xff]
        %v1092 = vld [vmem:[%s5 + $0x20] sm:$0xff]
        %v1093 = vld [vmem:[%s5 + $0x28] sm:$0xff]
        %v1094 = vld [vmem:[%s5 + $0x30] sm:$0xff]
        %v1095 = vld [vmem:[%s5 + $0x38] sm:$0xff]
        %v1096 = vld [vmem:[%s5 + $0x40] sm:$0xff]
        %v1097 = vld [vmem:[%s5 + $0x48] sm:$0xff]
        %v1098 = vld [vmem:[%s5 + $0x50] sm:$0xff]
        %v1099 = vld [vmem:[%s5 + $0x58] sm:$0xff]
        %v1100 = vld [vmem:[%s5 + $0x60] sm:$0xff]
        %v1101 = vld [vmem:[%s5 + $0x68] sm:$0xff]
        %v1102 = vld [vmem:[%s5 + $0x70] sm:$0xff]
        %v1103 = vld [vmem:[%s5 + $0x78] sm:$0xff]
        %v1104 = vld [vmem:[%s5 + $0x80] sm:$0xff]
        %v1105 = vld [vmem:[%s5 + $0x88] sm:$0xff]
        %v1106 = vld [vmem:[%s5 + $0x90] sm:$0xff]
        %v1107 = vld [vmem:[%s5 + $0x98] sm:$0xff]
        %v1108 = vld [vmem:[%s5 + $0xa0] sm:$0xff]
        %v1109 = vld [vmem:[%s5 + $0xa8] sm:$0xff]
        %v1110 = vld [vmem:[%s5 + $0xb0] sm:$0xff]
        %v1111 = vld [vmem:[%s5 + $0xb8] sm:$0xff]
        %v1112 = vld [vmem:[%s5 + $0xc0] sm:$0xff]
        %v1113 = vld [vmem:[%s5 + $0xc8] sm:$0xff]
        %v1114 = vld [vmem:[%s5 + $0xd0] sm:$0xff]
        %v1115 = vld [vmem:[%s5 + $0xd8] sm:$0xff]
        %v1116 = vld [vmem:[%s5 + $0xe0] sm:$0xff]
        %v1117 = vld [vmem:[%s5 + $0xe8] sm:$0xff]
        %v1118 = vld [vmem:[%s5 + $0xf0] sm:$0xff]
        %v1119 = vld [vmem:[%s5 + $0xf8] sm:$0xff]
        %v1120 = vld [vmem:[%s6] sm:$0x3]
        %v1122 = vlaneseq
        %v1123 = vshrl.u32 %v1122, 7
        %v1124 = vsub.s32 0, %v1123
        %v1125 = vrot.slane %v1120, %v1124
        %v1126 = vlaneseq
        %v1127 = vshrl.u32 %v1126, 7
        %v1128 = vsub.s32 1, %v1127
        %v1129 = vrot.slane %v1120, %v1128
        %v1164 = vunpack.c.l.b16 %v1088
        %v1165 = vunpack.c.h.b16 %v1088
        %v1166 = vunpack.c.l.b16 %v1089
        %v1167 = vunpack.c.h.b16 %v1089
        %v1168 = vunpack.c.l.b16 %v1090
        %v1169 = vunpack.c.h.b16 %v1090
        %v1170 = vunpack.c.l.b16 %v1091
        %v1171 = vunpack.c.h.b16 %v1091
        %v1172 = vunpack.c.l.b16 %v1092
        %v1173 = vunpack.c.h.b16 %v1092
        %v1174 = vunpack.c.l.b16 %v1093
        %v1175 = vunpack.c.h.b16 %v1093
        %v1176 = vunpack.c.l.b16 %v1094
        %v1177 = vunpack.c.h.b16 %v1094
        %v1178 = vunpack.c.l.b16 %v1095
        %v1179 = vunpack.c.h.b16 %v1095
        %v1180 = vunpack.c.l.b16 %v1096
        %v1181 = vunpack.c.h.b16 %v1096
        %v1182 = vunpack.c.l.b16 %v1097
        %v1183 = vunpack.c.h.b16 %v1097
        %v1184 = vunpack.c.l.b16 %v1098
        %v1185 = vunpack.c.h.b16 %v1098
        %v1186 = vunpack.c.l.b16 %v1099
        %v1187 = vunpack.c.h.b16 %v1099
        %v1188 = vunpack.c.l.b16 %v1100
        %v1189 = vunpack.c.h.b16 %v1100
        %v1190 = vunpack.c.l.b16 %v1101
        %v1191 = vunpack.c.h.b16 %v1101
        %v1192 = vunpack.c.l.b16 %v1102
        %v1193 = vunpack.c.h.b16 %v1102
        %v1194 = vunpack.c.l.b16 %v1103
        %v1195 = vunpack.c.h.b16 %v1103
        %v1196 = vunpack.c.l.b16 %v1104
        %v1197 = vunpack.c.h.b16 %v1104
        %v1198 = vunpack.c.l.b16 %v1105
        %v1199 = vunpack.c.h.b16 %v1105
        %v1200 = vunpack.c.l.b16 %v1106
        %v1201 = vunpack.c.h.b16 %v1106
        %v1202 = vunpack.c.l.b16 %v1107
        %v1203 = vunpack.c.h.b16 %v1107
        %v1204 = vunpack.c.l.b16 %v1108
        %v1205 = vunpack.c.h.b16 %v1108
        %v1206 = vunpack.c.l.b16 %v1109
        %v1207 = vunpack.c.h.b16 %v1109
        %v1208 = vunpack.c.l.b16 %v1110
        %v1209 = vunpack.c.h.b16 %v1110
        %v1210 = vunpack.c.l.b16 %v1111
        %v1211 = vunpack.c.h.b16 %v1111
        %v1212 = vunpack.c.l.b16 %v1112
        %v1213 = vunpack.c.h.b16 %v1112
        %v1214 = vunpack.c.l.b16 %v1113
        %v1215 = vunpack.c.h.b16 %v1113
        %v1216 = vunpack.c.l.b16 %v1114
        %v1217 = vunpack.c.h.b16 %v1114
        %v1218 = vunpack.c.l.b16 %v1115
        %v1219 = vunpack.c.h.b16 %v1115
        %v1220 = vunpack.c.l.b16 %v1116
        %v1221 = vunpack.c.h.b16 %v1116
        %v1222 = vunpack.c.l.b16 %v1117
        %v1223 = vunpack.c.h.b16 %v1117
        %v1224 = vunpack.c.l.b16 %v1118
        %v1225 = vunpack.c.h.b16 %v1118
        %v1226 = vunpack.c.l.b16 %v1119
        %v1227 = vunpack.c.h.b16 %v1119
        %v1228 = vpack.c.b16 %v1166, %v1164
        %v1229 = vpack.c.b16 %v1167, %v1165
        %v1230 = vpack.c.b16 %v1170, %v1168
        %v1231 = vpack.c.b16 %v1171, %v1169
        %v1232 = vpack.c.b16 %v1174, %v1172
        %v1233 = vpack.c.b16 %v1175, %v1173
        %v1234 = vpack.c.b16 %v1178, %v1176
        %v1235 = vpack.c.b16 %v1179, %v1177
        %v1236 = vpack.c.b16 %v1182, %v1180
        %v1237 = vpack.c.b16 %v1183, %v1181
        %v1238 = vpack.c.b16 %v1186, %v1184
        %v1239 = vpack.c.b16 %v1187, %v1185
        %v1240 = vpack.c.b16 %v1190, %v1188
        %v1241 = vpack.c.b16 %v1191, %v1189
        %v1242 = vpack.c.b16 %v1194, %v1192
        %v1243 = vpack.c.b16 %v1195, %v1193
        %v1244 = vpack.c.b16 %v1198, %v1196
        %v1245 = vpack.c.b16 %v1199, %v1197
        %v1246 = vpack.c.b16 %v1202, %v1200
        %v1247 = vpack.c.b16 %v1203, %v1201
        %v1248 = vpack.c.b16 %v1206, %v1204
        %v1249 = vpack.c.b16 %v1207, %v1205
        %v1250 = vpack.c.b16 %v1210, %v1208
        %v1251 = vpack.c.b16 %v1211, %v1209
        %v1252 = vpack.c.b16 %v1214, %v1212
        %v1253 = vpack.c.b16 %v1215, %v1213
        %v1254 = vpack.c.b16 %v1218, %v1216
        %v1255 = vpack.c.b16 %v1219, %v1217
        %v1256 = vpack.c.b16 %v1222, %v1220
        %v1257 = vpack.c.b16 %v1223, %v1221
        %v1258 = vpack.c.b16 %v1226, %v1224
        %v1259 = vpack.c.b16 %v1227, %v1225
        %1292 = vmatprep.subr.bf16.mxu0 %v1243
        %1293 = vmatpush1.bf16.msra.mxu0 %v1242
        %1294 = vmatprep.subr.bf16.mxu0 %v1241
        %1295 = vmatpush1.bf16.msra.mxu0 %v1240
        %1296 = vmatprep.subr.bf16.mxu0 %v1239
        %1297 = vmatpush1.bf16.msra.mxu0 %v1238
        %1298 = vmatprep.subr.bf16.mxu0 %v1237
        %1299 = vmatpush1.bf16.msra.mxu0 %v1236
        %1300 = vmatprep.subr.bf16.mxu0 %v1235
        %1301 = vmatpush1.bf16.msra.mxu0 %v1234
        %1302 = vmatprep.subr.bf16.mxu0 %v1233
        %1303 = vmatpush1.bf16.msra.mxu0 %v1232
        %1304 = vmatprep.subr.bf16.mxu0 %v1231
        %1305 = vmatpush1.bf16.msra.mxu0 %v1230
        %1306 = vmatprep.subr.bf16.mxu0 %v1229
        %1307 = vmatpush1.bf16.msra.mxu0 %v1228
        %1308 = vmatprep.subr.bf16.mxu0 %v1259
        %1309 = vmatpush2.bf16.msra.mxu0 %v1258
        %1310 = vmatprep.subr.bf16.mxu0 %v1257
        %1311 = vmatpush2.bf16.msra.mxu0 %v1256
        %1312 = vmatprep.subr.bf16.mxu0 %v1255
        %1313 = vmatpush2.bf16.msra.mxu0 %v1254
        %1314 = vmatprep.subr.bf16.mxu0 %v1253
        %1315 = vmatpush2.bf16.msra.mxu0 %v1252
        %1316 = vmatprep.subr.bf16.mxu0 %v1251
        %1317 = vmatpush2.bf16.msra.mxu0 %v1250
        %1318 = vmatprep.subr.bf16.mxu0 %v1249
        %1319 = vmatpush2.bf16.msra.mxu0 %v1248
        %1320 = vmatprep.subr.bf16.mxu0 %v1247
        %1321 = vmatpush2.bf16.msra.mxu0 %v1246
        %1322 = vmatprep.subr.bf16.mxu0 %v1245
        %1323 = vmatpush2.bf16.msra.mxu0 %v1244
        %1324 = vmatprep.mubr.bf16.mxu0 %v1073
        %1325 = vmatmul.mubr.bf16.gmra.mxu0 %v1072
        %v1326 = vpop.f32.mrf.mxu0
        %v1327 = vadd.f32 %v1125, %v1326
        %v1328 = vpop.f32.mrf.mxu0
        %v1329 = vadd.f32 %v1129, %v1328
        %v1330 = vpop.f32.mrf.mxu0
        %v1331 = vadd.f32 %v1125, %v1330
        %v1332 = vpop.f32.mrf.mxu0
        %v1333 = vadd.f32 %v1129, %v1332
        %1334 = vmatprep.mubr.bf16.mxu0 %v1075
        %1335 = vmatmul.mubr.bf16.gmra.mxu0 %v1074
        %v1336 = vpop.f32.mrf.mxu0
        %v1337 = vadd.f32 %v1125, %v1336
        %v1338 = vpop.f32.mrf.mxu0
        %v1339 = vadd.f32 %v1129, %v1338
        %v1340 = vpop.f32.mrf.mxu0
        %v1341 = vadd.f32 %v1125, %v1340
        %v1342 = vpop.f32.mrf.mxu0
        %v1343 = vadd.f32 %v1129, %v1342
        %1344 = vmatprep.mubr.bf16.mxu0 %v1077
        %1345 = vmatmul.mubr.bf16.gmra.mxu0 %v1076
        %v1346 = vpop.f32.mrf.mxu0
        %v1347 = vadd.f32 %v1125, %v1346
        %v1348 = vpop.f32.mrf.mxu0
        %v1349 = vadd.f32 %v1129, %v1348
        %v1350 = vpop.f32.mrf.mxu0
        %v1351 = vadd.f32 %v1125, %v1350
        %v1352 = vpop.f32.mrf.mxu0
        %v1353 = vadd.f32 %v1129, %v1352
        %1354 = vmatprep.mubr.bf16.mxu0 %v1079
        %1355 = vmatmul.mubr.bf16.gmra.mxu0 %v1078
        %v1356 = vpop.f32.mrf.mxu0
        %v1357 = vadd.f32 %v1125, %v1356
        %v1358 = vpop.f32.mrf.mxu0
        %v1359 = vadd.f32 %v1129, %v1358
        %v1360 = vpop.f32.mrf.mxu0
        %v1361 = vadd.f32 %v1125, %v1360
        %v1362 = vpop.f32.mrf.mxu0
        %v1363 = vadd.f32 %v1129, %v1362
        %1364 = vmatprep.mubr.bf16.mxu0 %v1081
        %1365 = vmatmul.mubr.bf16.gmra.mxu0 %v1080
        %v1366 = vpop.f32.mrf.mxu0
        %v1367 = vadd.f32 %v1125, %v1366
        %v1368 = vpop.f32.mrf.mxu0
        %v1369 = vadd.f32 %v1129, %v1368
        %v1370 = vpop.f32.mrf.mxu0
        %v1371 = vadd.f32 %v1125, %v1370
        %v1372 = vpop.f32.mrf.mxu0
        %v1373 = vadd.f32 %v1129, %v1372
        %1374 = vmatprep.mubr.bf16.mxu0 %v1083
        %1375 = vmatmul.mubr.bf16.gmra.mxu0 %v1082
        %v1376 = vpop.f32.mrf.mxu0
        %v1377 = vadd.f32 %v1125, %v1376
        %v1378 = vpop.f32.mrf.mxu0
        %v1379 = vadd.f32 %v1129, %v1378
        %v1380 = vpop.f32.mrf.mxu0
        %v1381 = vadd.f32 %v1125, %v1380
        %v1382 = vpop.f32.mrf.mxu0
        %v1383 = vadd.f32 %v1129, %v1382
        %1384 = vmatprep.mubr.bf16.mxu0 %v1085
        %1385 = vmatmul.mubr.bf16.gmra.mxu0 %v1084
        %v1386 = vpop.f32.mrf.mxu0
        %v1387 = vadd.f32 %v1125, %v1386
        %v1388 = vpop.f32.mrf.mxu0
        %v1389 = vadd.f32 %v1129, %v1388
        %v1390 = vpop.f32.mrf.mxu0
        %v1391 = vadd.f32 %v1125, %v1390
        %v1392 = vpop.f32.mrf.mxu0
        %v1393 = vadd.f32 %v1129, %v1392
        %1394 = vmatprep.mubr.bf16.mxu0 %v1087
        %1395 = vmatmul.mubr.bf16.gmra.mxu0 %v1086
        %v1396 = vpop.f32.mrf.mxu0
        %v1397 = vadd.f32 %v1125, %v1396
        %v1398 = vpop.f32.mrf.mxu0
        %v1399 = vadd.f32 %v1129, %v1398
        %v1400 = vpop.f32.mrf.mxu0
        %v1401 = vadd.f32 %v1125, %v1400
        %v1402 = vpop.f32.mrf.mxu0
        %v1403 = vadd.f32 %v1129, %v1402
        %1404 = vdwg.mxu0
        %v1405 = vmax.f32 %v1327, 0.0
        %v1406 = vmax.f32 %v1329, 0.0
        %v1407 = vmax.f32 %v1331, 0.0
        %v1408 = vmax.f32 %v1333, 0.0
        %v1409 = vmax.f32 %v1337, 0.0
        %v1410 = vmax.f32 %v1339, 0.0
        %v1411 = vmax.f32 %v1341, 0.0
        %v1412 = vmax.f32 %v1343, 0.0
        %v1413 = vmax.f32 %v1347, 0.0
        %v1414 = vmax.f32 %v1349, 0.0
        %v1415 = vmax.f32 %v1351, 0.0
        %v1416 = vmax.f32 %v1353, 0.0
        %v1417 = vmax.f32 %v1357, 0.0
        %v1418 = vmax.f32 %v1359, 0.0
        %v1419 = vmax.f32 %v1361, 0.0
        %v1420 = vmax.f32 %v1363, 0.0
        %v1421 = vmax.f32 %v1367, 0.0
        %v1422 = vmax.f32 %v1369, 0.0
        %v1423 = vmax.f32 %v1371, 0.0
        %v1424 = vmax.f32 %v1373, 0.0
        %v1425 = vmax.f32 %v1377, 0.0
        %v1426 = vmax.f32 %v1379, 0.0
        %v1427 = vmax.f32 %v1381, 0.0
        %v1428 = vmax.f32 %v1383, 0.0
        %v1429 = vmax.f32 %v1387, 0.0
        %v1430 = vmax.f32 %v1389, 0.0
        %v1431 = vmax.f32 %v1391, 0.0
        %v1432 = vmax.f32 %v1393, 0.0
        %v1433 = vmax.f32 %v1397, 0.0
        %v1434 = vmax.f32 %v1399, 0.0
        %v1435 = vmax.f32 %v1401, 0.0
        %v1436 = vmax.f32 %v1403, 0.0
        %v1437 = vpack.c.bf16 %v1407, %v1405
        %v1438 = vpack.c.bf16 %v1411, %v1409
        %v1439 = vpack.c.bf16 %v1415, %v1413
        %v1440 = vpack.c.bf16 %v1419, %v1417
        %v1441 = vpack.c.bf16 %v1423, %v1421
        %v1442 = vpack.c.bf16 %v1427, %v1425
        %v1443 = vpack.c.bf16 %v1431, %v1429
        %v1444 = vpack.c.bf16 %v1435, %v1433
        %v1445 = vld [vmem:[%s7] sm:$0xf]
        %v1446 = vld [vmem:[%s7 + $0x4] sm:$0xf]
        %v1447 = vld [vmem:[%s7 + $0x8] sm:$0xf]
        %v1448 = vld [vmem:[%s7 + $0xc] sm:$0xf]
        %v1449 = vld [vmem:[%s7 + $0x10] sm:$0xf]
        %v1450 = vld [vmem:[%s7 + $0x14] sm:$0xf]
        %v1451 = vld [vmem:[%s7 + $0x18] sm:$0xf]
        %v1452 = vld [vmem:[%s7 + $0x1c] sm:$0xf]
        %v1453 = vld [vmem:[%s7 + $0x20] sm:$0xf]
        %v1454 = vld [vmem:[%s7 + $0x24] sm:$0xf]
        %v1455 = vld [vmem:[%s7 + $0x28] sm:$0xf]
        %v1456 = vld [vmem:[%s7 + $0x2c] sm:$0xf]
        %v1457 = vld [vmem:[%s7 + $0x30] sm:$0xf]
        %v1458 = vld [vmem:[%s7 + $0x34] sm:$0xf]
        %v1459 = vld [vmem:[%s7 + $0x38] sm:$0xf]
        %v1460 = vld [vmem:[%s7 + $0x3c] sm:$0xf]
        %v1461 = vld [vmem:[%s8] sm:$0x1]
        %v1463 = vlaneseq
        %v1464 = vshrl.u32 %v1463, 7
        %v1465 = vsub.s32 0, %v1464
        %v1466 = vrot.slane %v1461, %v1465
        %v1484 = vunpack.c.l.b16 %v1445
        %v1485 = vunpack.c.l.b16 %v1446
        %v1486 = vunpack.c.l.b16 %v1447
        %v1487 = vunpack.c.l.b16 %v1448
        %v1488 = vunpack.c.l.b16 %v1449
        %v1489 = vunpack.c.l.b16 %v1450
        %v1490 = vunpack.c.l.b16 %v1451
        %v1491 = vunpack.c.l.b16 %v1452
        %v1492 = vunpack.c.l.b16 %v1453
        %v1493 = vunpack.c.l.b16 %v1454
        %v1494 = vunpack.c.l.b16 %v1455
        %v1495 = vunpack.c.l.b16 %v1456
        %v1496 = vunpack.c.l.b16 %v1457
        %v1497 = vunpack.c.l.b16 %v1458
        %v1498 = vunpack.c.l.b16 %v1459
        %v1499 = vunpack.c.l.b16 %v1460
        %v1500 = vpack.c.b16 %v1485, %v1484
        %v1501 = vpack.c.b16 %v1487, %v1486
        %v1502 = vpack.c.b16 %v1489, %v1488
        %v1503 = vpack.c.b16 %v1491, %v1490
        %v1504 = vpack.c.b16 %v1493, %v1492
        %v1505 = vpack.c.b16 %v1495, %v1494
        %v1506 = vpack.c.b16 %v1497, %v1496
        %v1507 = vpack.c.b16 %v1499, %v1498
        %1516 = vmatprep.subr.bf16.mxu0 0
        %1517 = vmatpush1.bf16.msra.mxu0 %v1507
        %1518 = vmatprep.subr.bf16.mxu0 0
        %1519 = vmatpush1.bf16.msra.mxu0 %v1506
        %1520 = vmatprep.subr.bf16.mxu0 0
        %1521 = vmatpush1.bf16.msra.mxu0 %v1505
        %1522 = vmatprep.subr.bf16.mxu0 0
        %1523 = vmatpush1.bf16.msra.mxu0 %v1504
        %1524 = vmatprep.subr.bf16.mxu0 0
        %1525 = vmatpush1.bf16.msra.mxu0 %v1503
        %1526 = vmatprep.subr.bf16.mxu0 0
        %1527 = vmatpush1.bf16.msra.mxu0 %v1502
        %1528 = vmatprep.subr.bf16.mxu0 0
        %1529 = vmatpush1.bf16.msra.mxu0 %v1501
        %1530 = vmatprep.subr.bf16.mxu0 0
        %1531 = vmatpush1.bf16.msra.mxu0 %v1500
        %1532 = vmatprep.subr.bf16.mxu0 0
        %1533 = vmatpush2.bf16.msra.mxu0 0
        %1534 = vmatprep.subr.bf16.mxu0 0
        %1535 = vmatpush2.bf16.msra.mxu0 0
        %1536 = vmatprep.subr.bf16.mxu0 0
        %1537 = vmatpush2.bf16.msra.mxu0 0
        %1538 = vmatprep.subr.bf16.mxu0 0
        %1539 = vmatpush2.bf16.msra.mxu0 0
        %1540 = vmatprep.subr.bf16.mxu0 0
        %1541 = vmatpush2.bf16.msra.mxu0 0
        %1542 = vmatprep.subr.bf16.mxu0 0
        %1543 = vmatpush2.bf16.msra.mxu0 0
        %1544 = vmatprep.subr.bf16.mxu0 0
        %1545 = vmatpush2.bf16.msra.mxu0 0
        %1546 = vmatprep.subr.bf16.mxu0 0
        %1547 = vmatpush2.bf16.msra.mxu0 0
        %1548 = vmatprep.mubr.bf16.mxu0 0
        %1549 = vmatmul.mubr.bf16.gmra.mxu0 %v1437
        %v1550 = vpop.f32.mrf.mxu0
        %v1551 = vadd.f32 %v1466, %v1550
        %v1552 = vpop.f32.mrf.mxu0
        %v1553 = vpop.f32.mrf.mxu0
        %v1554 = vadd.f32 %v1466, %v1553
        %v1555 = vpop.f32.mrf.mxu0
        %1556 = vmatprep.mubr.bf16.mxu0 0
        %1557 = vmatmul.mubr.bf16.gmra.mxu0 %v1438
        %v1558 = vpop.f32.mrf.mxu0
        %v1559 = vadd.f32 %v1466, %v1558
        %v1560 = vpop.f32.mrf.mxu0
        %v1561 = vpop.f32.mrf.mxu0
        %v1562 = vadd.f32 %v1466, %v1561
        %v1563 = vpop.f32.mrf.mxu0
        %1564 = vmatprep.mubr.bf16.mxu0 0
        %1565 = vmatmul.mubr.bf16.gmra.mxu0 %v1439
        %v1566 = vpop.f32.mrf.mxu0
        %v1567 = vadd.f32 %v1466, %v1566
        %v1568 = vpop.f32.mrf.mxu0
        %v1569 = vpop.f32.mrf.mxu0
        %v1570 = vadd.f32 %v1466, %v1569
        %v1571 = vpop.f32.mrf.mxu0
        %1572 = vmatprep.mubr.bf16.mxu0 0
        %1573 = vmatmul.mubr.bf16.gmra.mxu0 %v1440
        %v1574 = vpop.f32.mrf.mxu0
        %v1575 = vadd.f32 %v1466, %v1574
        %v1576 = vpop.f32.mrf.mxu0
        %v1577 = vpop.f32.mrf.mxu0
        %v1578 = vadd.f32 %v1466, %v1577
        %v1579 = vpop.f32.mrf.mxu0
        %1580 = vmatprep.mubr.bf16.mxu0 0
        %1581 = vmatmul.mubr.bf16.gmra.mxu0 %v1441
        %v1582 = vpop.f32.mrf.mxu0
        %v1583 = vadd.f32 %v1466, %v1582
        %v1584 = vpop.f32.mrf.mxu0
        %v1585 = vpop.f32.mrf.mxu0
        %v1586 = vadd.f32 %v1466, %v1585
        %v1587 = vpop.f32.mrf.mxu0
        %1588 = vmatprep.mubr.bf16.mxu0 0
        %1589 = vmatmul.mubr.bf16.gmra.mxu0 %v1442
        %v1590 = vpop.f32.mrf.mxu0
        %v1591 = vadd.f32 %v1466, %v1590
        %v1592 = vpop.f32.mrf.mxu0
        %v1593 = vpop.f32.mrf.mxu0
        %v1594 = vadd.f32 %v1466, %v1593
        %v1595 = vpop.f32.mrf.mxu0
        %1596 = vmatprep.mubr.bf16.mxu0 0
        %1597 = vmatmul.mubr.bf16.gmra.mxu0 %v1443
        %v1598 = vpop.f32.mrf.mxu0
        %v1599 = vadd.f32 %v1466, %v1598
        %v1600 = vpop.f32.mrf.mxu0
        %v1601 = vpop.f32.mrf.mxu0
        %v1602 = vadd.f32 %v1466, %v1601
        %v1603 = vpop.f32.mrf.mxu0
        %1604 = vmatprep.mubr.bf16.mxu0 0
        %1605 = vmatmul.mubr.bf16.gmra.mxu0 %v1444
        %v1606 = vpop.f32.mrf.mxu0
        %v1607 = vadd.f32 %v1466, %v1606
        %v1608 = vpop.f32.mrf.mxu0
        %v1609 = vpop.f32.mrf.mxu0
        %v1610 = vadd.f32 %v1466, %v1609
        %v1611 = vpop.f32.mrf.mxu0
        %1612 = vdwg.mxu0
        %v1613 = vmax.f32 %v1551, 0.0
        %v1614 = vmax.f32 %v1554, 0.0
        %v1615 = vmax.f32 %v1559, 0.0
        %v1616 = vmax.f32 %v1562, 0.0
        %v1617 = vmax.f32 %v1567, 0.0
        %v1618 = vmax.f32 %v1570, 0.0
        %v1619 = vmax.f32 %v1575, 0.0
        %v1620 = vmax.f32 %v1578, 0.0
        %v1621 = vmax.f32 %v1583, 0.0
        %v1622 = vmax.f32 %v1586, 0.0
        %v1623 = vmax.f32 %v1591, 0.0
        %v1624 = vmax.f32 %v1594, 0.0
        %v1625 = vmax.f32 %v1599, 0.0
        %v1626 = vmax.f32 %v1602, 0.0
        %v1627 = vmax.f32 %v1607, 0.0
        %v1628 = vmax.f32 %v1610, 0.0
        %1630 = vset.pattern.permute.xlu0 0
        %1631 = vperm.xlu0 %1630, %v1406
        %v1632 = vpop.permute.xlu0 %1631
        %1635 = vset.pattern.permute.xlu0 0
        %1636 = vperm.xlu0 %1635, %v1408
        %v1637 = vpop.permute.xlu0 %1636
        %1640 = vset.pattern.permute.xlu0 0
        %1641 = vperm.xlu0 %1640, %v1410
        %v1642 = vpop.permute.xlu0 %1641
        %1645 = vset.pattern.permute.xlu0 0
        %1646 = vperm.xlu0 %1645, %v1412
        %v1647 = vpop.permute.xlu0 %1646
        %1650 = vset.pattern.permute.xlu0 0
        %1651 = vperm.xlu0 %1650, %v1414
        %v1652 = vpop.permute.xlu0 %1651
        %1655 = vset.pattern.permute.xlu0 0
        %1656 = vperm.xlu0 %1655, %v1416
        %v1657 = vpop.permute.xlu0 %1656
        %1660 = vset.pattern.permute.xlu0 0
        %1661 = vperm.xlu0 %1660, %v1418
        %v1662 = vpop.permute.xlu0 %1661
        %1665 = vset.pattern.permute.xlu0 0
        %1666 = vperm.xlu0 %1665, %v1420
        %v1667 = vpop.permute.xlu0 %1666
        %1670 = vset.pattern.permute.xlu0 0
        %1671 = vperm.xlu0 %1670, %v1422
        %v1672 = vpop.permute.xlu0 %1671
        %1675 = vset.pattern.permute.xlu0 0
        %1676 = vperm.xlu0 %1675, %v1424
        %v1677 = vpop.permute.xlu0 %1676
        %1680 = vset.pattern.permute.xlu0 0
        %1681 = vperm.xlu0 %1680, %v1426
        %v1682 = vpop.permute.xlu0 %1681
        %1685 = vset.pattern.permute.xlu0 0
        %1686 = vperm.xlu0 %1685, %v1428
        %v1687 = vpop.permute.xlu0 %1686
        %1690 = vset.pattern.permute.xlu0 0
        %1691 = vperm.xlu0 %1690, %v1430
        %v1692 = vpop.permute.xlu0 %1691
        %1695 = vset.pattern.permute.xlu0 0
        %1696 = vperm.xlu0 %1695, %v1432
        %v1697 = vpop.permute.xlu0 %1696
        %1700 = vset.pattern.permute.xlu0 0
        %1701 = vperm.xlu0 %1700, %v1434
        %v1702 = vpop.permute.xlu0 %1701
        %1705 = vset.pattern.permute.xlu0 0
        %1706 = vperm.xlu0 %1705, %v1436
        %v1707 = vpop.permute.xlu0 %1706
        %v1709 = vmul.f32 %v1613, %v1632
        %v1710 = vmul.f32 %v1614, %v1637
        %v1711 = vmul.f32 %v1615, %v1642
        %v1712 = vmul.f32 %v1616, %v1647
        %v1713 = vmul.f32 %v1617, %v1652
        %v1714 = vmul.f32 %v1618, %v1657
        %v1715 = vmul.f32 %v1619, %v1662
        %v1716 = vmul.f32 %v1620, %v1667
        %v1717 = vmul.f32 %v1621, %v1672
        %v1718 = vmul.f32 %v1622, %v1677
        %v1719 = vmul.f32 %v1623, %v1682
        %v1720 = vmul.f32 %v1624, %v1687
        %v1721 = vmul.f32 %v1625, %v1692
        %v1722 = vmul.f32 %v1626, %v1697
        %v1723 = vmul.f32 %v1627, %v1702
        %v1724 = vmul.f32 %v1628, %v1707
        %v1725 = vpack.c.bf16 %v1710, %v1709
        %v1726 = vpack.c.bf16 %v1712, %v1711
        %v1727 = vpack.c.bf16 %v1714, %v1713
        %v1728 = vpack.c.bf16 %v1716, %v1715
        %v1729 = vpack.c.bf16 %v1718, %v1717
        %v1730 = vpack.c.bf16 %v1720, %v1719
        %v1731 = vpack.c.bf16 %v1722, %v1721
        %v1732 = vpack.c.bf16 %v1724, %v1723
        %v1733 = vld [vmem:[#allocation2] sm:$0xff]
        %v1734 = vld [vmem:[#allocation2 + $0x8] sm:$0xf]
        %v1735 = vld [vmem:[#allocation2 + $0xc] sm:$0xff]
        %v1736 = vld [vmem:[#allocation2 + $0x14] sm:$0xf]
        %v1737 = vld [vmem:[#allocation2 + $0x18] sm:$0xff]
        %v1738 = vld [vmem:[#allocation2 + $0x20] sm:$0xf]
        %v1739 = vld [vmem:[#allocation2 + $0x24] sm:$0xff]
        %v1740 = vld [vmem:[#allocation2 + $0x2c] sm:$0xf]
        %v1741 = vld [vmem:[#allocation2 + $0x30] sm:$0xff]
        %v1742 = vld [vmem:[#allocation2 + $0x38] sm:$0xf]
        %v1743 = vld [vmem:[#allocation2 + $0x3c] sm:$0xff]
        %v1744 = vld [vmem:[#allocation2 + $0x44] sm:$0xf]
        %v1745 = vld [vmem:[#allocation2 + $0x48] sm:$0xff]
        %v1746 = vld [vmem:[#allocation2 + $0x50] sm:$0xf]
        %v1747 = vld [vmem:[#allocation2 + $0x54] sm:$0xff]
        %v1748 = vld [vmem:[#allocation2 + $0x5c] sm:$0xf]
        %v1749 = vld [vmem:[#allocation2 + $0x60] sm:$0xff]
        %v1750 = vld [vmem:[#allocation2 + $0x68] sm:$0xf]
        %v1751 = vld [vmem:[#allocation2 + $0x6c] sm:$0xff]
        %v1752 = vld [vmem:[#allocation2 + $0x74] sm:$0xf]
        %v1753 = vld [vmem:[#allocation2 + $0x78] sm:$0xff]
        %v1754 = vld [vmem:[#allocation2 + $0x80] sm:$0xf]
        %v1755 = vld [vmem:[#allocation2 + $0x84] sm:$0xff]
        %v1756 = vld [vmem:[#allocation2 + $0x8c] sm:$0xf]
        %v1757 = vld [vmem:[#allocation2 + $0x90] sm:$0xff]
        %v1758 = vld [vmem:[#allocation2 + $0x98] sm:$0xf]
        %v1759 = vld [vmem:[#allocation2 + $0x9c] sm:$0xff]
        %v1760 = vld [vmem:[#allocation2 + $0xa4] sm:$0xf]
        %v1761 = vld [vmem:[#allocation2 + $0xa8] sm:$0xff]
        %v1762 = vld [vmem:[#allocation2 + $0xb0] sm:$0xf]
        %v1763 = vld [vmem:[#allocation2 + $0xb4] sm:$0xff]
        %v1764 = vld [vmem:[#allocation2 + $0xbc] sm:$0xf]
        %v1765 = vld [vmem:[%s10] sm:$0x7]
        %v1767 = vlaneseq
        %v1768 = vshrl.u32 %v1767, 7
        %v1769 = vsub.s32 0, %v1768
        %v1770 = vrot.slane %v1765, %v1769
        %v1771 = vlaneseq
        %v1772 = vshrl.u32 %v1771, 7
        %v1773 = vsub.s32 1, %v1772
        %v1774 = vrot.slane %v1765, %v1773
        %v1775 = vlaneseq
        %v1776 = vshrl.u32 %v1775, 7
        %v1777 = vsub.s32 2, %v1776
        %v1778 = vrot.slane %v1765, %v1777
        %v1814 = vunpack.c.l.b16 %v1733
        %v1815 = vunpack.c.h.b16 %v1733
        %v1816 = vunpack.c.l.b16 %v1734
        %v1817 = vunpack.c.l.b16 %v1735
        %v1818 = vunpack.c.h.b16 %v1735
        %v1819 = vunpack.c.l.b16 %v1736
        %v1820 = vunpack.c.l.b16 %v1737
        %v1821 = vunpack.c.h.b16 %v1737
        %v1822 = vunpack.c.l.b16 %v1738
        %v1823 = vunpack.c.l.b16 %v1739
        %v1824 = vunpack.c.h.b16 %v1739
        %v1825 = vunpack.c.l.b16 %v1740
        %v1826 = vunpack.c.l.b16 %v1741
        %v1827 = vunpack.c.h.b16 %v1741
        %v1828 = vunpack.c.l.b16 %v1742
        %v1829 = vunpack.c.l.b16 %v1743
        %v1830 = vunpack.c.h.b16 %v1743
        %v1831 = vunpack.c.l.b16 %v1744
        %v1832 = vunpack.c.l.b16 %v1745
        %v1833 = vunpack.c.h.b16 %v1745
        %v1834 = vunpack.c.l.b16 %v1746
        %v1835 = vunpack.c.l.b16 %v1747
        %v1836 = vunpack.c.h.b16 %v1747
        %v1837 = vunpack.c.l.b16 %v1748
        %v1838 = vunpack.c.l.b16 %v1749
        %v1839 = vunpack.c.h.b16 %v1749
        %v1840 = vunpack.c.l.b16 %v1750
        %v1841 = vunpack.c.l.b16 %v1751
        %v1842 = vunpack.c.h.b16 %v1751
        %v1843 = vunpack.c.l.b16 %v1752
        %v1844 = vunpack.c.l.b16 %v1753
        %v1845 = vunpack.c.h.b16 %v1753
        %v1846 = vunpack.c.l.b16 %v1754
        %v1847 = vunpack.c.l.b16 %v1755
        %v1848 = vunpack.c.h.b16 %v1755
        %v1849 = vunpack.c.l.b16 %v1756
        %v1850 = vunpack.c.l.b16 %v1757
        %v1851 = vunpack.c.h.b16 %v1757
        %v1852 = vunpack.c.l.b16 %v1758
        %v1853 = vunpack.c.l.b16 %v1759
        %v1854 = vunpack.c.h.b16 %v1759
        %v1855 = vunpack.c.l.b16 %v1760
        %v1856 = vunpack.c.l.b16 %v1761
        %v1857 = vunpack.c.h.b16 %v1761
        %v1858 = vunpack.c.l.b16 %v1762
        %v1859 = vunpack.c.l.b16 %v1763
        %v1860 = vunpack.c.h.b16 %v1763
        %v1861 = vunpack.c.l.b16 %v1764
        %v1862 = vpack.c.b16 %v1817, %v1814
        %v1863 = vpack.c.b16 %v1818, %v1815
        %v1864 = vpack.c.b16 %v1819, %v1816
        %v1865 = vpack.c.b16 %v1823, %v1820
        %v1866 = vpack.c.b16 %v1824, %v1821
        %v1867 = vpack.c.b16 %v1825, %v1822
        %v1868 = vpack.c.b16 %v1829, %v1826
        %v1869 = vpack.c.b16 %v1830, %v1827
        %v1870 = vpack.c.b16 %v1831, %v1828
        %v1871 = vpack.c.b16 %v1835, %v1832
        %v1872 = vpack.c.b16 %v1836, %v1833
        %v1873 = vpack.c.b16 %v1837, %v1834
        %v1874 = vpack.c.b16 %v1841, %v1838
        %v1875 = vpack.c.b16 %v1842, %v1839
        %v1876 = vpack.c.b16 %v1843, %v1840
        %v1877 = vpack.c.b16 %v1847, %v1844
        %v1878 = vpack.c.b16 %v1848, %v1845
        %v1879 = vpack.c.b16 %v1849, %v1846
        %v1880 = vpack.c.b16 %v1853, %v1850
        %v1881 = vpack.c.b16 %v1854, %v1851
        %v1882 = vpack.c.b16 %v1855, %v1852
        %v1883 = vpack.c.b16 %v1859, %v1856
        %v1884 = vpack.c.b16 %v1860, %v1857
        %v1885 = vpack.c.b16 %v1861, %v1858
        %1910 = vmatprep.subr.bf16.mxu0 %v1884
        %1911 = vmatpush1.bf16.msra.mxu0 %v1883
        %1912 = vmatprep.subr.bf16.mxu0 %v1881
        %1913 = vmatpush1.bf16.msra.mxu0 %v1880
        %1914 = vmatprep.subr.bf16.mxu0 %v1878
        %1915 = vmatpush1.bf16.msra.mxu0 %v1877
        %1916 = vmatprep.subr.bf16.mxu0 %v1875
        %1917 = vmatpush1.bf16.msra.mxu0 %v1874
        %1918 = vmatprep.subr.bf16.mxu0 %v1872
        %1919 = vmatpush1.bf16.msra.mxu0 %v1871
        %1920 = vmatprep.subr.bf16.mxu0 %v1869
        %1921 = vmatpush1.bf16.msra.mxu0 %v1868
        %1922 = vmatprep.subr.bf16.mxu0 %v1866
        %1923 = vmatpush1.bf16.msra.mxu0 %v1865
        %1924 = vmatprep.subr.bf16.mxu0 %v1863
        %1925 = vmatpush1.bf16.msra.mxu0 %v1862
        %1926 = vmatprep.subr.bf16.mxu0 0
        %1927 = vmatpush2.bf16.msra.mxu0 0
        %1928 = vmatprep.subr.bf16.mxu0 0
        %1929 = vmatpush2.bf16.msra.mxu0 0
        %1930 = vmatprep.subr.bf16.mxu0 0
        %1931 = vmatpush2.bf16.msra.mxu0 0
        %1932 = vmatprep.subr.bf16.mxu0 0
        %1933 = vmatpush2.bf16.msra.mxu0 0
        %1934 = vmatprep.subr.bf16.mxu0 0
        %1935 = vmatpush2.bf16.msra.mxu0 0
        %1936 = vmatprep.subr.bf16.mxu0 0
        %1937 = vmatpush2.bf16.msra.mxu0 0
        %1938 = vmatprep.subr.bf16.mxu0 0
        %1939 = vmatpush2.bf16.msra.mxu0 0
        %1940 = vmatprep.subr.bf16.mxu0 0
        %1941 = vmatpush2.bf16.msra.mxu0 0
        %1942 = vmatprep.mubr.bf16.mxu0 0
        %1943 = vmatmul.mubr.bf16.gmra.mxu0 %v1725
        %v1944 = vpop.f32.mrf.mxu0
        %v1945 = vadd.f32 %v1770, %v1944
        %v1946 = vpop.f32.mrf.mxu0
        %v1947 = vadd.f32 %v1774, %v1946
        %v1948 = vpop.f32.mrf.mxu0
        %v1949 = vadd.f32 %v1770, %v1948
        %v1950 = vpop.f32.mrf.mxu0
        %v1951 = vadd.f32 %v1774, %v1950
        %1952 = vmatprep.mubr.bf16.mxu0 0
        %1953 = vmatmul.mubr.bf16.gmra.mxu0 %v1726
        %v1954 = vpop.f32.mrf.mxu0
        %v1955 = vadd.f32 %v1770, %v1954
        %v1956 = vpop.f32.mrf.mxu0
        %v1957 = vadd.f32 %v1774, %v1956
        %v1958 = vpop.f32.mrf.mxu0
        %v1959 = vadd.f32 %v1770, %v1958
        %v1960 = vpop.f32.mrf.mxu0
        %v1961 = vadd.f32 %v1774, %v1960
        %1962 = vmatprep.mubr.bf16.mxu0 0
        %1963 = vmatmul.mubr.bf16.gmra.mxu0 %v1727
        %v1964 = vpop.f32.mrf.mxu0
        %v1965 = vadd.f32 %v1770, %v1964
        %v1966 = vpop.f32.mrf.mxu0
        %v1967 = vadd.f32 %v1774, %v1966
        %v1968 = vpop.f32.mrf.mxu0
        %v1969 = vadd.f32 %v1770, %v1968
        %v1970 = vpop.f32.mrf.mxu0
        %v1971 = vadd.f32 %v1774, %v1970
        %1972 = vmatprep.mubr.bf16.mxu0 0
        %1973 = vmatmul.mubr.bf16.gmra.mxu0 %v1728
        %v1974 = vpop.f32.mrf.mxu0
        %v1975 = vadd.f32 %v1770, %v1974
        %v1976 = vpop.f32.mrf.mxu0
        %v1977 = vadd.f32 %v1774, %v1976
        %v1978 = vpop.f32.mrf.mxu0
        %v1979 = vadd.f32 %v1770, %v1978
        %v1980 = vpop.f32.mrf.mxu0
        %v1981 = vadd.f32 %v1774, %v1980
        %1982 = vmatprep.mubr.bf16.mxu0 0
        %1983 = vmatmul.mubr.bf16.gmra.mxu0 %v1729
        %v1984 = vpop.f32.mrf.mxu0
        %v1985 = vadd.f32 %v1770, %v1984
        %v1986 = vpop.f32.mrf.mxu0
        %v1987 = vadd.f32 %v1774, %v1986
        %v1988 = vpop.f32.mrf.mxu0
        %v1989 = vadd.f32 %v1770, %v1988
        %v1990 = vpop.f32.mrf.mxu0
        %v1991 = vadd.f32 %v1774, %v1990
        %1992 = vmatprep.mubr.bf16.mxu0 0
        %1993 = vmatmul.mubr.bf16.gmra.mxu0 %v1730
        %v1994 = vpop.f32.mrf.mxu0
        %v1995 = vadd.f32 %v1770, %v1994
        %v1996 = vpop.f32.mrf.mxu0
        %v1997 = vadd.f32 %v1774, %v1996
        %v1998 = vpop.f32.mrf.mxu0
        %v1999 = vadd.f32 %v1770, %v1998
        %v2000 = vpop.f32.mrf.mxu0
        %v2001 = vadd.f32 %v1774, %v2000
        %2002 = vmatprep.mubr.bf16.mxu0 0
        %2003 = vmatmul.mubr.bf16.gmra.mxu0 %v1731
        %v2004 = vpop.f32.mrf.mxu0
        %v2005 = vadd.f32 %v1770, %v2004
        %v2006 = vpop.f32.mrf.mxu0
        %v2007 = vadd.f32 %v1774, %v2006
        %v2008 = vpop.f32.mrf.mxu0
        %v2009 = vadd.f32 %v1770, %v2008
        %v2010 = vpop.f32.mrf.mxu0
        %v2011 = vadd.f32 %v1774, %v2010
        %2012 = vmatprep.mubr.bf16.mxu0 0
        %2013 = vmatmul.mubr.bf16.gmra.mxu0 %v1732
        %v2014 = vpop.f32.mrf.mxu0
        %v2015 = vadd.f32 %v1770, %v2014
        %v2016 = vpop.f32.mrf.mxu0
        %v2017 = vadd.f32 %v1774, %v2016
        %v2018 = vpop.f32.mrf.mxu0
        %v2019 = vadd.f32 %v1770, %v2018
        %v2020 = vpop.f32.mrf.mxu0
        %v2021 = vadd.f32 %v1774, %v2020
        %2022 = vdwg.mxu0
        %2023 = vmatprep.subr.bf16.mxu0 0
        %2024 = vmatpush1.bf16.msra.mxu0 %v1885
        %2025 = vmatprep.subr.bf16.mxu0 0
        %2026 = vmatpush1.bf16.msra.mxu0 %v1882
        %2027 = vmatprep.subr.bf16.mxu0 0
        %2028 = vmatpush1.bf16.msra.mxu0 %v1879
        %2029 = vmatprep.subr.bf16.mxu0 0
        %2030 = vmatpush1.bf16.msra.mxu0 %v1876
        %2031 = vmatprep.subr.bf16.mxu0 0
        %2032 = vmatpush1.bf16.msra.mxu0 %v1873
        %2033 = vmatprep.subr.bf16.mxu0 0
        %2034 = vmatpush1.bf16.msra.mxu0 %v1870
        %2035 = vmatprep.subr.bf16.mxu0 0
        %2036 = vmatpush1.bf16.msra.mxu0 %v1867
        %2037 = vmatprep.subr.bf16.mxu0 0
        %2038 = vmatpush1.bf16.msra.mxu0 %v1864
        %2039 = vmatprep.subr.bf16.mxu0 0
        %2040 = vmatpush2.bf16.msra.mxu0 0
        %2041 = vmatprep.subr.bf16.mxu0 0
        %2042 = vmatpush2.bf16.msra.mxu0 0
        %2043 = vmatprep.subr.bf16.mxu0 0
        %2044 = vmatpush2.bf16.msra.mxu0 0
        %2045 = vmatprep.subr.bf16.mxu0 0
        %2046 = vmatpush2.bf16.msra.mxu0 0
        %2047 = vmatprep.subr.bf16.mxu0 0
        %2048 = vmatpush2.bf16.msra.mxu0 0
        %2049 = vmatprep.subr.bf16.mxu0 0
        %2050 = vmatpush2.bf16.msra.mxu0 0
        %2051 = vmatprep.subr.bf16.mxu0 0
        %2052 = vmatpush2.bf16.msra.mxu0 0
        %2053 = vmatprep.subr.bf16.mxu0 0
        %2054 = vmatpush2.bf16.msra.mxu0 0
        %2055 = vmatprep.mubr.bf16.mxu0 0
        %2056 = vmatmul.mubr.bf16.gmra.mxu0 %v1725
        %v2057 = vpop.f32.mrf.mxu0
        %v2058 = vadd.f32 %v1778, %v2057
        %v2059 = vpop.f32.mrf.mxu0
        %v2060 = vpop.f32.mrf.mxu0
        %v2061 = vadd.f32 %v1778, %v2060
        %v2062 = vpop.f32.mrf.mxu0
        %2063 = vmatprep.mubr.bf16.mxu0 0
        %2064 = vmatmul.mubr.bf16.gmra.mxu0 %v1726
        %v2065 = vpop.f32.mrf.mxu0
        %v2066 = vadd.f32 %v1778, %v2065
        %v2067 = vpop.f32.mrf.mxu0
        %v2068 = vpop.f32.mrf.mxu0
        %v2069 = vadd.f32 %v1778, %v2068
        %v2070 = vpop.f32.mrf.mxu0
        %2071 = vmatprep.mubr.bf16.mxu0 0
        %2072 = vmatmul.mubr.bf16.gmra.mxu0 %v1727
        %v2073 = vpop.f32.mrf.mxu0
        %v2074 = vadd.f32 %v1778, %v2073
        %v2075 = vpop.f32.mrf.mxu0
        %v2076 = vpop.f32.mrf.mxu0
        %v2077 = vadd.f32 %v1778, %v2076
        %v2078 = vpop.f32.mrf.mxu0
        %2079 = vmatprep.mubr.bf16.mxu0 0
        %2080 = vmatmul.mubr.bf16.gmra.mxu0 %v1728
        %v2081 = vpop.f32.mrf.mxu0
        %v2082 = vadd.f32 %v1778, %v2081
        %v2083 = vpop.f32.mrf.mxu0
        %v2084 = vpop.f32.mrf.mxu0
        %v2085 = vadd.f32 %v1778, %v2084
        %v2086 = vpop.f32.mrf.mxu0
        %2087 = vmatprep.mubr.bf16.mxu0 0
        %2088 = vmatmul.mubr.bf16.gmra.mxu0 %v1729
        %v2089 = vpop.f32.mrf.mxu0
        %v2090 = vadd.f32 %v1778, %v2089
        %v2091 = vpop.f32.mrf.mxu0
        %v2092 = vpop.f32.mrf.mxu0
        %v2093 = vadd.f32 %v1778, %v2092
        %v2094 = vpop.f32.mrf.mxu0
        %2095 = vmatprep.mubr.bf16.mxu0 0
        %2096 = vmatmul.mubr.bf16.gmra.mxu0 %v1730
        %v2097 = vpop.f32.mrf.mxu0
        %v2098 = vadd.f32 %v1778, %v2097
        %v2099 = vpop.f32.mrf.mxu0
        %v2100 = vpop.f32.mrf.mxu0
        %v2101 = vadd.f32 %v1778, %v2100
        %v2102 = vpop.f32.mrf.mxu0
        %2103 = vmatprep.mubr.bf16.mxu0 0
        %2104 = vmatmul.mubr.bf16.gmra.mxu0 %v1731
        %v2105 = vpop.f32.mrf.mxu0
        %v2106 = vadd.f32 %v1778, %v2105
        %v2107 = vpop.f32.mrf.mxu0
        %v2108 = vpop.f32.mrf.mxu0
        %v2109 = vadd.f32 %v1778, %v2108
        %v2110 = vpop.f32.mrf.mxu0
        %2111 = vmatprep.mubr.bf16.mxu0 0
        %2112 = vmatmul.mubr.bf16.gmra.mxu0 %v1732
        %v2113 = vpop.f32.mrf.mxu0
        %v2114 = vadd.f32 %v1778, %v2113
        %v2115 = vpop.f32.mrf.mxu0
        %v2116 = vpop.f32.mrf.mxu0
        %v2117 = vadd.f32 %v1778, %v2116
        %v2118 = vpop.f32.mrf.mxu0
        %2119 = vdwg.mxu0
        %v2120 = vmul.f32 %v1945, 0.17677669
        %v2121 = vmul.f32 %v1949, 0.17677669
        %v2122 = vmul.f32 %v1955, 0.17677669
        %v2123 = vmul.f32 %v1959, 0.17677669
        %v2124 = vmul.f32 %v1965, 0.17677669
        %v2125 = vmul.f32 %v1969, 0.17677669
        %v2126 = vmul.f32 %v1975, 0.17677669
        %v2127 = vmul.f32 %v1979, 0.17677669
        %v2128 = vmul.f32 %v1985, 0.17677669
        %v2129 = vmul.f32 %v1989, 0.17677669
        %v2130 = vmul.f32 %v1995, 0.17677669
        %v2131 = vmul.f32 %v1999, 0.17677669
        %v2132 = vmul.f32 %v2005, 0.17677669
        %v2133 = vmul.f32 %v2009, 0.17677669
        %v2134 = vmul.f32 %v2015, 0.17677669
        %v2135 = vmul.f32 %v2019, 0.17677669
        %v2136 = vpack.c.bf16 %v2121, %v2120
        %v2137 = vpack.c.bf16 %v2123, %v2122
        %v2138 = vpack.c.bf16 %v2125, %v2124
        %v2139 = vpack.c.bf16 %v2127, %v2126
        %v2140 = vpack.c.bf16 %v2129, %v2128
        %v2141 = vpack.c.bf16 %v2131, %v2130
        %v2142 = vpack.c.bf16 %v2133, %v2132
        %v2143 = vpack.c.bf16 %v2135, %v2134
        %v2152 = vunpack.c.l.b16 %v2136
        %v2153 = vunpack.c.h.b16 %v2136
        %v2154 = vunpack.c.l.b16 %v2137
        %v2155 = vunpack.c.h.b16 %v2137
        %v2156 = vunpack.c.l.b16 %v2138
        %v2157 = vunpack.c.h.b16 %v2138
        %v2158 = vunpack.c.l.b16 %v2139
        %v2159 = vunpack.c.h.b16 %v2139
        %v2160 = vunpack.c.l.b16 %v2140
        %v2161 = vunpack.c.h.b16 %v2140
        %v2162 = vunpack.c.l.b16 %v2141
        %v2163 = vunpack.c.h.b16 %v2141
        %v2164 = vunpack.c.l.b16 %v2142
        %v2165 = vunpack.c.h.b16 %v2142
        %v2166 = vunpack.c.l.b16 %v2143
        %v2167 = vunpack.c.h.b16 %v2143
        %v2168 = vpack.c.b16 %v2152, %v2152
        %v2169 = vpack.c.b16 %v2153, %v2153
        %v2170 = vpack.c.b16 %v2154, %v2154
        %v2171 = vpack.c.b16 %v2155, %v2155
        %v2172 = vpack.c.b16 %v2156, %v2156
        %v2173 = vpack.c.b16 %v2157, %v2157
        %v2174 = vpack.c.b16 %v2158, %v2158
        %v2175 = vpack.c.b16 %v2159, %v2159
        %v2176 = vpack.c.b16 %v2160, %v2160
        %v2177 = vpack.c.b16 %v2161, %v2161
        %v2178 = vpack.c.b16 %v2162, %v2162
        %v2179 = vpack.c.b16 %v2163, %v2163
        %v2180 = vpack.c.b16 %v2164, %v2164
        %v2181 = vpack.c.b16 %v2165, %v2165
        %v2182 = vpack.c.b16 %v2166, %v2166
        %v2183 = vpack.c.b16 %v2167, %v2167
        %2200 = vst [vmem:[%s453] sm:$0xf] %v2168
        %2201 = vst [vmem:[%s453 + $0x4] sm:$0xf] %v2169
        %2202 = vst [vmem:[%s453 + $0x8] sm:$0xf] %v2170
        %2203 = vst [vmem:[%s453 + $0xc] sm:$0xf] %v2171
        %2204 = vst [vmem:[%s453 + $0x10] sm:$0xf] %v2172
        %2205 = vst [vmem:[%s453 + $0x14] sm:$0xf] %v2173
        %2206 = vst [vmem:[%s453 + $0x18] sm:$0xf] %v2174
        %2207 = vst [vmem:[%s453 + $0x1c] sm:$0xf] %v2175
        %2208 = vst [vmem:[%s453 + $0x20] sm:$0xf] %v2176
        %2209 = vst [vmem:[%s453 + $0x24] sm:$0xf] %v2177
        %2210 = vst [vmem:[%s453 + $0x28] sm:$0xf] %v2178
        %2211 = vst [vmem:[%s453 + $0x2c] sm:$0xf] %v2179
        %2212 = vst [vmem:[%s453 + $0x30] sm:$0xf] %v2180
        %2213 = vst [vmem:[%s453 + $0x34] sm:$0xf] %v2181
        %2214 = vst [vmem:[%s453 + $0x38] sm:$0xf] %v2182
        %2215 = vst [vmem:[%s453 + $0x3c] sm:$0xf] %v2183
        %2216 = vxpose.xlu0.b32.start [1/16] %v1947, 128
        %2217 = vxpose.xlu0.b32.cont [2/16] %v1951, 128
        %2218 = vxpose.xlu0.b32.cont [3/16] %v1957, 128
        %2219 = vxpose.xlu0.b32.cont [4/16] %v1961, 128
        %2220 = vxpose.xlu0.b32.cont [5/16] %v1967, 128
        %2221 = vxpose.xlu0.b32.cont [6/16] %v1971, 128
        %2222 = vxpose.xlu0.b32.cont [7/16] %v1977, 128
        %2223 = vxpose.xlu0.b32.cont [8/16] %v1981, 128
        %2224 = vxpose.xlu0.b32.cont [9/16] %v1987, 128
        %2225 = vxpose.xlu0.b32.cont [10/16] %v1991, 128
        %2226 = vxpose.xlu0.b32.cont [11/16] %v1997, 128
        %2227 = vxpose.xlu0.b32.cont [12/16] %v2001, 128
        %2228 = vxpose.xlu0.b32.cont [13/16] %v2007, 128
        %2229 = vxpose.xlu0.b32.cont [14/16] %v2011, 128
        %2230 = vxpose.xlu0.b32.cont [15/16] %v2017, 128
        %2231 = vxpose.xlu0.b32.end [16/16] %v2021, 128
        %v2232 = vpop.trf.xlu0
        %v2233 = vpop.trf.xlu0
        %v2234 = vpop.trf.xlu0
        %v2235 = vpop.trf.xlu0
        %v2236 = vpop.trf.xlu0
        %v2237 = vpop.trf.xlu0
        %v2238 = vpop.trf.xlu0
        %v2239 = vpop.trf.xlu0
        %v2240 = vpop.trf.xlu0
        %v2241 = vpop.trf.xlu0
        %v2242 = vpop.trf.xlu0
        %v2243 = vpop.trf.xlu0
        %v2244 = vpop.trf.xlu0
        %v2245 = vpop.trf.xlu0
        %v2246 = vpop.trf.xlu0
        %v2247 = vpop.trf.xlu0
        %v2248 = vpack.c.bf16 %v2233, %v2232
        %v2249 = vpack.c.bf16 %v2235, %v2234
        %v2250 = vpack.c.bf16 %v2237, %v2236
        %v2251 = vpack.c.bf16 %v2239, %v2238
        %v2252 = vpack.c.bf16 %v2241, %v2240
        %v2253 = vpack.c.bf16 %v2243, %v2242
        %v2254 = vpack.c.bf16 %v2245, %v2244
        %v2255 = vpack.c.bf16 %v2247, %v2246
        %v2264 = vunpack.c.l.b16 %v2248
        %v2265 = vunpack.c.h.b16 %v2248
        %v2266 = vunpack.c.l.b16 %v2249
        %v2267 = vunpack.c.h.b16 %v2249
        %v2268 = vunpack.c.l.b16 %v2250
        %v2269 = vunpack.c.h.b16 %v2250
        %v2270 = vunpack.c.l.b16 %v2251
        %v2271 = vunpack.c.h.b16 %v2251
        %v2272 = vunpack.c.l.b16 %v2252
        %v2273 = vunpack.c.h.b16 %v2252
        %v2274 = vunpack.c.l.b16 %v2253
        %v2275 = vunpack.c.h.b16 %v2253
        %v2276 = vunpack.c.l.b16 %v2254
        %v2277 = vunpack.c.h.b16 %v2254
        %v2278 = vunpack.c.l.b16 %v2255
        %v2279 = vunpack.c.h.b16 %v2255
        %v2280 = vpack.c.b16 %v2264, %v2264
        %v2281 = vpack.c.b16 %v2265, %v2265
        %v2282 = vpack.c.b16 %v2266, %v2266
        %v2283 = vpack.c.b16 %v2267, %v2267
        %v2284 = vpack.c.b16 %v2268, %v2268
        %v2285 = vpack.c.b16 %v2269, %v2269
        %v2286 = vpack.c.b16 %v2270, %v2270
        %v2287 = vpack.c.b16 %v2271, %v2271
        %v2288 = vpack.c.b16 %v2272, %v2272
        %v2289 = vpack.c.b16 %v2273, %v2273
        %v2290 = vpack.c.b16 %v2274, %v2274
        %v2291 = vpack.c.b16 %v2275, %v2275
        %v2292 = vpack.c.b16 %v2276, %v2276
        %v2293 = vpack.c.b16 %v2277, %v2277
        %v2294 = vpack.c.b16 %v2278, %v2278
        %v2295 = vpack.c.b16 %v2279, %v2279
        %2312 = vst [vmem:[%s460] sm:$0xf] %v2280
        %2313 = vst [vmem:[%s460 + $0x4] sm:$0xf] %v2281
        %2314 = vst [vmem:[%s460 + $0x8] sm:$0xf] %v2282
        %2315 = vst [vmem:[%s460 + $0xc] sm:$0xf] %v2283
        %2316 = vst [vmem:[%s460 + $0x10] sm:$0xf] %v2284
        %2317 = vst [vmem:[%s460 + $0x14] sm:$0xf] %v2285
        %2318 = vst [vmem:[%s460 + $0x18] sm:$0xf] %v2286
        %2319 = vst [vmem:[%s460 + $0x1c] sm:$0xf] %v2287
        %2320 = vst [vmem:[%s460 + $0x20] sm:$0xf] %v2288
        %2321 = vst [vmem:[%s460 + $0x24] sm:$0xf] %v2289
        %2322 = vst [vmem:[%s460 + $0x28] sm:$0xf] %v2290
        %2323 = vst [vmem:[%s460 + $0x2c] sm:$0xf] %v2291
        %2324 = vst [vmem:[%s460 + $0x30] sm:$0xf] %v2292
        %2325 = vst [vmem:[%s460 + $0x34] sm:$0xf] %v2293
        %2326 = vst [vmem:[%s460 + $0x38] sm:$0xf] %v2294
        %2327 = vst [vmem:[%s460 + $0x3c] sm:$0xf] %v2295
        %v2328 = vpack.c.bf16 %v2061, %v2058
        %v2329 = vpack.c.bf16 %v2069, %v2066
        %v2330 = vpack.c.bf16 %v2077, %v2074
        %v2331 = vpack.c.bf16 %v2085, %v2082
        %v2332 = vpack.c.bf16 %v2093, %v2090
        %v2333 = vpack.c.bf16 %v2101, %v2098
        %v2334 = vpack.c.bf16 %v2109, %v2106
        %v2335 = vpack.c.bf16 %v2117, %v2114
        %v2344 = vunpack.c.l.b16 %v2328
        %v2345 = vunpack.c.h.b16 %v2328
        %v2346 = vunpack.c.l.b16 %v2329
        %v2347 = vunpack.c.h.b16 %v2329
        %v2348 = vunpack.c.l.b16 %v2330
        %v2349 = vunpack.c.h.b16 %v2330
        %v2350 = vunpack.c.l.b16 %v2331
        %v2351 = vunpack.c.h.b16 %v2331
        %v2352 = vunpack.c.l.b16 %v2332
        %v2353 = vunpack.c.h.b16 %v2332
        %v2354 = vunpack.c.l.b16 %v2333
        %v2355 = vunpack.c.h.b16 %v2333
        %v2356 = vunpack.c.l.b16 %v2334
        %v2357 = vunpack.c.h.b16 %v2334
        %v2358 = vunpack.c.l.b16 %v2335
        %v2359 = vunpack.c.h.b16 %v2335
        %v2360 = vpack.c.b16 %v2344, %v2344
        %v2361 = vpack.c.b16 %v2345, %v2345
        %v2362 = vpack.c.b16 %v2346, %v2346
        %v2363 = vpack.c.b16 %v2347, %v2347
        %v2364 = vpack.c.b16 %v2348, %v2348
        %v2365 = vpack.c.b16 %v2349, %v2349
        %v2366 = vpack.c.b16 %v2350, %v2350
        %v2367 = vpack.c.b16 %v2351, %v2351
        %v2368 = vpack.c.b16 %v2352, %v2352
        %v2369 = vpack.c.b16 %v2353, %v2353
        %v2370 = vpack.c.b16 %v2354, %v2354
        %v2371 = vpack.c.b16 %v2355, %v2355
        %v2372 = vpack.c.b16 %v2356, %v2356
        %v2373 = vpack.c.b16 %v2357, %v2357
        %v2374 = vpack.c.b16 %v2358, %v2358
        %v2375 = vpack.c.b16 %v2359, %v2359
        %2392 = vst [vmem:[%s467] sm:$0xf] %v2360
        %2393 = vst [vmem:[%s467 + $0x4] sm:$0xf] %v2361
        %2394 = vst [vmem:[%s467 + $0x8] sm:$0xf] %v2362
        %2395 = vst [vmem:[%s467 + $0xc] sm:$0xf] %v2363
        %2396 = vst [vmem:[%s467 + $0x10] sm:$0xf] %v2364
        %2397 = vst [vmem:[%s467 + $0x14] sm:$0xf] %v2365
        %2398 = vst [vmem:[%s467 + $0x18] sm:$0xf] %v2366
        %2399 = vst [vmem:[%s467 + $0x1c] sm:$0xf] %v2367
        %2400 = vst [vmem:[%s467 + $0x20] sm:$0xf] %v2368
        %2401 = vst [vmem:[%s467 + $0x24] sm:$0xf] %v2369
        %2402 = vst [vmem:[%s467 + $0x28] sm:$0xf] %v2370
        %2403 = vst [vmem:[%s467 + $0x2c] sm:$0xf] %v2371
        %2404 = vst [vmem:[%s467 + $0x30] sm:$0xf] %v2372
        %2405 = vst [vmem:[%s467 + $0x34] sm:$0xf] %v2373
        %2406 = vst [vmem:[%s467 + $0x38] sm:$0xf] %v2374
        %2407 = vst [vmem:[%s467 + $0x3c] sm:$0xf] %v2375
        %s2408 = sand.u32 %s276, 1
        %s2409 = scalar_lea.sflag [#allocation4], %s2408
        %s2410 = sand.u32 %s276, 1
        %s2411 = smul.addr %s2410, 64
        %s2412 = scalar_lea.vmem [#allocation5], %s2411
        %s2413 = sand.u32 %s32, 1
        %s2414 = scalar_lea.sflag [#allocation7], %s2413
        %s2415 = sand.u32 %s302, 1
        %s2416 = smul.addr %s2415, 64
        %s2417 = scalar_lea.vmem [#allocation6], %s2416
        %s2418 = sand.u32 %s32, 1
        %s2419 = scalar_lea.sflag [#allocation7], %s2418
        %s2420 = sand.u32 %s328, 1
        %s2421 = smul.addr %s2420, 64
        %s2422 = scalar_lea.vmem [#allocation8], %s2421
        // Predicated region
        $region69: #{tpu_custom_call.1} parent=63 // pred_check
          %p2423 = pneg %p286
        $region70: #{tpu_custom_call.1} parent=63 // pred_check_branch
          %2425 = sbr.rel (%p2423) target = $region72
        $region71: #{tpu_custom_call.1} parent=63 // pred_region
          %s2426 = smul.u32 16, %s32
          %s2428 = ssub.s32 1024, 1024
          %2429 = vsyncadd %s2409, %s2428
          %s2430 = smul.addr %s2426, 64
          %s2431 = scalar_lea.hbm %s11, %s2430
          %s2432 = sshll.u32 %s2412, 4
          %s2433 = int_to_ptr.vmem [resolvable:$true] %s2432
          %2438 = dma.vmem_to_hbm [thread:$0]  %s2433, 1024, %s2431, %s2409, 64, 64, 4
        $region72: #{tpu_custom_call.1} parent=63 // pred_fallthru
          _
        // Predicated region
        $region73: #{tpu_custom_call.1} parent=63 // pred_check
          %p2439 = pneg %p312
        $region74: #{tpu_custom_call.1} parent=63 // pred_check_branch
          %2441 = sbr.rel (%p2439) target = $region76
        $region75: #{tpu_custom_call.1} parent=63 // pred_region
          %s2443 = ssub.s32 1024, 1024
          %2444 = vsyncadd %s2414, %s2443
          %s2445 = smul.addr %s32, 64
          %s2446 = scalar_lea.hbm %s12, %s2445
          %s2447 = sshll.u32 %s2417, 4
          %s2448 = int_to_ptr.vmem [resolvable:$true] %s2447
          %2453 = dma.vmem_to_hbm [thread:$0]  %s2448, 1024, %s2446, %s2414, 64, 256, 4
        $region76: #{tpu_custom_call.1} parent=63 // pred_fallthru
          _
        // Predicated region
        $region77: #{tpu_custom_call.1} parent=63 // pred_check
          %p2454 = pneg %p338
        $region78: #{tpu_custom_call.1} parent=63 // pred_check_branch
          %2456 = sbr.rel (%p2454) target = $region80
        $region79: #{tpu_custom_call.1} parent=63 // pred_region
          %s2457 = smul.u32 16, %s32
          %s2459 = ssub.s32 1024, 1024
          %2460 = vsyncadd %s2419, %s2459
          %s2461 = smul.addr %s2457, 64
          %s2462 = scalar_lea.hbm %s13, %s2461
          %s2463 = sshll.u32 %s2422, 4
          %s2464 = int_to_ptr.vmem [resolvable:$true] %s2463
          %2469 = dma.vmem_to_hbm [thread:$0]  %s2464, 1024, %s2462, %s2419, 64, 64, 4
        $region80: #{tpu_custom_call.1} parent=63 // pred_fallthru
          _
      $region64: #{tpu_custom_call.1} parent=5 // pred_fallthru
        _
      %p2470 = scmp.le.s32.totalorder 2, %s27
      // Predicated region
      $region81: #{tpu_custom_call.1} parent=5 // pred_check
        %p2471 = pneg %p2470
      $region82: #{tpu_custom_call.1} parent=5 // pred_check_branch
        %2473 = sbr.rel (%p2471) target = $region84
      $region83: #{tpu_custom_call.1} parent=5 // pred_region
        %s2474 = ssub.s32 %s27, 2
        // Predicated region
        $region85: #{tpu_custom_call.1} parent=83 // pred_check
          %p2475 = pneg %p292
        $region86: #{tpu_custom_call.1} parent=83 // pred_check_branch
          %2477 = sbr.rel (%p2475) target = $region88
        $region87: #{tpu_custom_call.1} parent=83 // pred_region
          %s2478 = sand.u32 %s277, 1
          %s2479 = scalar_lea.sflag [#allocation4], %s2478
          %s2480 = sand.u32 %s277, 1
          %s2481 = smul.addr %s2480, 64
          %s2482 = scalar_lea.vmem [#allocation5], %s2481
          %2483 = dma.done %s2479, 1024
        $region88: #{tpu_custom_call.1} parent=83 // pred_fallthru
          _
        // Predicated region
        $region89: #{tpu_custom_call.1} parent=83 // pred_check
          %p2484 = pneg %p318
        $region90: #{tpu_custom_call.1} parent=83 // pred_check_branch
          %2486 = sbr.rel (%p2484) target = $region92
        $region91: #{tpu_custom_call.1} parent=83 // pred_region
          %s2487 = sand.u32 %s33, 1
          %s2488 = scalar_lea.sflag [#allocation7], %s2487
          %s2489 = sand.u32 %s303, 1
          %s2490 = smul.addr %s2489, 64
          %s2491 = scalar_lea.vmem [#allocation6], %s2490
          %2492 = dma.done %s2488, 1024
        $region92: #{tpu_custom_call.1} parent=83 // pred_fallthru
          _
        // Predicated region
        $region93: #{tpu_custom_call.1} parent=83 // pred_check
          %p2493 = pneg %p344
        $region94: #{tpu_custom_call.1} parent=83 // pred_check_branch
          %2495 = sbr.rel (%p2493) target = $region96
        $region95: #{tpu_custom_call.1} parent=83 // pred_region
          %s2496 = sand.u32 %s33, 1
          %s2497 = scalar_lea.sflag [#allocation7], %s2496
          %s2498 = sand.u32 %s329, 1
          %s2499 = smul.addr %s2498, 64
          %s2500 = scalar_lea.vmem [#allocation8], %s2499
          %2501 = dma.done %s2497, 1024
        $region96: #{tpu_custom_call.1} parent=83 // pred_fallthru
          _
      $region84: #{tpu_custom_call.1} parent=5 // pred_fallthru
        _
    $region6: #{tpu_custom_call.1} parent=1 // loop_footer
      %s31 = sadd.s32 1, %s27
    $region7: #{tpu_custom_call.1} parent=1 // loop_footer_branch
      %26 = sbr.rel target = $region3
    $region8: #{tpu_custom_call.1} parent=1 // loop_exit
      _
    %2502 = vsyncpa [#allocation3], 1
    %s2503 = scalar_lea.sflag [#allocation3], 1
    %2504 = vsyncpa %s2503, 1
    %2505 = vsyncpa [#allocation4], 1
    %s2506 = scalar_lea.sflag [#allocation4], 1
    %2507 = vsyncpa %s2506, 1
    %2508 = vsyncpa [#allocation7], 1
    %s2509 = scalar_lea.sflag [#allocation7], 1
    %2510 = vsyncpa %s2509, 1

</llo_original>
